<compile_context>
chip_gen: v7x
topology: tpu7x:2x2x1
jax: 0.10.0
libtpu: 0.0.40
codegen_flags: <defaults>
</compile_context>

<pallas_src>
import functools

import jax
import jax.numpy as jnp
import numpy as np
from jax.experimental import pallas as pl
from jax.experimental.pallas import tpu as pltpu

BN_EPS = 1e-5
VMEM_LIMIT_BYTES = 48 * 1024 * 1024


def _round_up(x, m):
    return (x + m - 1) // m * m


# --------------------------------------------------------------------------
# Phase 1: 3x3 conv from a channel-major padded-image slab + BN statistics.
# Grid = (core_split, images_per_split); stats are resident accumulators.
#   x_ref   : (1, Cin, Lin)   bf16 padded image, flattened spatial (+halo pad)
#   w_ref   : (9, Cout, Cin)  bf16 conv taps (tap = kh*3 + kw), resident
#   mask_ref: (1, Lp)         f32  1.0 at real output positions, else 0.0
#   y_ref   : (1, Cout, Lp)   bf16 raw conv output (stride-1 grid, full rows)
#   sum_ref : (1, Cout, 1)    f32  per-channel running sum      (per split)
#   sq_ref  : (1, Cout, 1)    f32  per-channel running sum(x^2) (per split)
# --------------------------------------------------------------------------
def _conv_stats_kernel(x_ref, w_ref, mask_ref, y_ref, sum_ref, sq_ref, *,
                       wp, lp):
    @pl.when(pl.program_id(1) == 0)
    def _init():
        sum_ref[...] = jnp.zeros_like(sum_ref)
        sq_ref[...] = jnp.zeros_like(sq_ref)

    # Build the 9 taps in-kernel: tap (kh, kw) is the same flattened image
    # slab shifted by kh*Wp + kw lanes.  Nine MXU matmuls accumulated in f32.
    acc = None
    for kh in range(3):
        for kw in range(3):
            x_tap = x_ref[0, :, pl.ds(kh * wp + kw, lp)]      # (Cin, Lp) bf16
            w_tap = w_ref[kh * 3 + kw]                        # (Cout, Cin) bf16
            d = jnp.dot(w_tap, x_tap, preferred_element_type=jnp.float32)
            acc = d if acc is None else acc + d

    # Zero halo / lane-pad / off-stride columns so they contribute exactly 0
    # to the statistics (and the stored garbage columns are benign).
    y = acc * mask_ref[...]                                   # (Cout, Lp) f32
    y_ref[...] = y[None].astype(y_ref.dtype)

    # TODO(synk): E[x^2]-E[x]^2 in f32 can cancel for huge M with |mean|>>std;
    # switch to per-step Welford merging if that regime matters.
    sum_ref[...] = sum_ref[...] + jnp.sum(y, axis=1, keepdims=True)[None]
    sq_ref[...] = sq_ref[...] + jnp.sum(y * y, axis=1, keepdims=True)[None]


# --------------------------------------------------------------------------
# Phase 2: per-channel affine (folded BN) + ReLU, large lane-dense blocks.
#   y_ref    : (nb, Cout, Lp) bf16
#   scale_ref: (1, Cout, 1)   f32   gamma / sqrt(var + eps)
#   shift_ref: (1, Cout, 1)   f32   beta - mean * scale
#   o_ref    : (nb, Cout, Lp) f32
# --------------------------------------------------------------------------
def _bn_relu_kernel(y_ref, scale_ref, shift_ref, o_ref):
    y = y_ref[...].astype(jnp.float32)
    y = y * scale_ref[...] + shift_ref[...]
    o_ref[...] = jnp.maximum(y, 0.0).astype(o_ref.dtype)


def conv3x3_forward(x_nchw, weight_oihw, conv_bias, gamma, beta,
                    stride=1, padding=0):
    """Conv2d(k=3, stride, padding) -> BatchNorm2d (train mode) -> ReLU.

    `conv_bias` is accepted for API parity; under training-mode BatchNorm it
    cancels exactly (y + b - mean(y + b) == y - mean(y)) so it is not added.
    """
    del conv_bias
    N, Cin, H, W = x_nchw.shape
    Cout = weight_oihw.shape[0]
    Hp, Wp = H + 2 * padding, W + 2 * padding
    Hout = (Hp - 3) // stride + 1
    Wout = (Wp - 3) // stride + 1
    assert Hout > 0 and Wout > 0, "output spatial size must be positive"

    H1 = (Hout - 1) * stride + 1            # stride-1 rows actually computed
    L = H1 * Wp                             # raw columns per image
    Lp = _round_up(L, 128)                  # lane-padded (lane-dense stores)
    Lin = _round_up(Lp + 2 * Wp + 2, 128)   # input slab incl. 3x3 halo reach
    M = N * Hout * Wout                     # true per-channel BN count

    # Split the batch across TensorCores (v7x megacore); no-op on 1-TC chips.
    n_split = 2 if N >= 2 else 1
    n_per_split = -(-N // n_split)
    n_pad = n_split * n_per_split           # zero images contribute 0 to stats

    # ---- glue: spatial pad + flatten to channel-major bf16 slabs ----------
    # (no NCHW->NHWC transpose and no 9x im2col materialization)
    xp = jnp.pad(x_nchw.astype(jnp.float32),
                 ((0, n_pad - N), (0, 0), (padding, padding),
                  (padding, padding)))
    xf = xp.reshape(n_pad, Cin, Hp * Wp)
    xf = jnp.pad(xf, ((0, 0), (0, 0), (0, Lin - Hp * Wp))).astype(jnp.bfloat16)

    # Weights (Cout,Cin,3,3) -> (9, Cout, Cin), tap index = kh*3 + kw.
    w9 = jnp.transpose(weight_oihw, (2, 3, 0, 1)).reshape(9, Cout, Cin)
    w9 = w9.astype(jnp.bfloat16)

    # Validity mask over the Lp stride-1 columns: real (strided, non-halo)
    # output positions get 1.0.  Built host-side; tiny, resident in VMEM.
    valid = np.zeros((H1, Wp), np.float32)
    valid[0:H1:stride, 0:(Wout - 1) * stride + 1:stride] = 1.0
    mask = np.zeros((1, Lp), np.float32)
    mask[0, :L] = valid.reshape(-1)
    mask = jnp.asarray(mask)

    # ---- phase 1: conv + per-channel sum / sumsq ---------------------------
    kern1 = functools.partial(_conv_stats_kernel, wp=Wp, lp=Lp)
    y_t, s, sq = pl.pallas_call(
        kern1,
        out_shape=(
            jax.ShapeDtypeStruct((n_pad, Cout, Lp), jnp.bfloat16),
            jax.ShapeDtypeStruct((n_split, Cout, 1), jnp.float32),
            jax.ShapeDtypeStruct((n_split, Cout, 1), jnp.float32),
        ),
        grid_spec=pltpu.PrefetchScalarGridSpec(
            num_scalar_prefetch=0,
            grid=(n_split, n_per_split),
            in_specs=[
                pl.BlockSpec((1, Cin, Lin),
                             lambda c, i: (c * n_per_split + i, 0, 0)),
                pl.BlockSpec((9, Cout, Cin), lambda c, i: (0, 0, 0)),
                pl.BlockSpec((1, Lp), lambda c, i: (0, 0)),
            ],
            out_specs=[
                pl.BlockSpec((1, Cout, Lp),
                             lambda c, i: (c * n_per_split + i, 0, 0)),
                pl.BlockSpec((1, Cout, 1), lambda c, i: (c, 0, 0)),
                pl.BlockSpec((1, Cout, 1), lambda c, i: (c, 0, 0)),
            ],
        ),
        compiler_params=pltpu.CompilerParams(
            dimension_semantics=("parallel", "arbitrary"),
            vmem_limit_bytes=VMEM_LIMIT_BYTES),
        cost_estimate=pl.CostEstimate(
            flops=2 * n_pad * Lp * 9 * Cin * Cout,
            transcendentals=0,
            bytes_accessed=2 * (n_pad * Cin * Lin + 9 * Cout * Cin
                                + n_pad * Cout * Lp) + 4 * Lp),
    )(xf, w9, mask)

    # ---- glue: finalize BN statistics (O(Cout), plain JAX) -----------------
    s = jnp.sum(s, axis=0)                          # merge TensorCore splits
    sq = jnp.sum(sq, axis=0)
    mean = s / M
    var = jnp.maximum(sq / M - mean * mean, 0.0)
    inv_std = jax.lax.rsqrt(var + BN_EPS)
    scale = gamma.reshape(Cout, 1).astype(jnp.float32) * inv_std
    shift = beta.reshape(Cout, 1).astype(jnp.float32) - mean * scale
    scale = scale[None]                             # (1, Cout, 1)
    shift = shift[None]

    # ---- phase 2: per-channel affine + ReLU --------------------------------
    blk_bytes = Cout * Lp * 6                       # bf16 read + f32 write
    images_per_step = 1
    for d in range(1, n_pad + 1):
        if n_pad % d == 0 and d * blk_bytes <= (8 << 20):
            images_per_step = d
    out_full = pl.pallas_call(
        _bn_relu_kernel,
        out_shape=jax.ShapeDtypeStruct((n_pad, Cout, Lp), jnp.float32),
        grid_spec=pltpu.PrefetchScalarGridSpec(
            num_scalar_prefetch=0,
            grid=(n_pad // images_per_step,),
            in_specs=[
                pl.BlockSpec((images_per_step, Cout, Lp), lambda i: (i, 0, 0)),
                pl.BlockSpec((1, Cout, 1), lambda i: (0, 0, 0)),
                pl.BlockSpec((1, Cout, 1), lambda i: (0, 0, 0)),
            ],
            out_specs=pl.BlockSpec((images_per_step, Cout, Lp),
                                   lambda i: (i, 0, 0)),
        ),
        compiler_params=pltpu.CompilerParams(
            dimension_semantics=("parallel",),
            vmem_limit_bytes=VMEM_LIMIT_BYTES),
    )(y_t, scale, shift)

    # ---- glue: drop halo / pad / off-stride columns, already channel-major --
    out = out_full[:N, :, :L].reshape(N, Cout, H1, Wp)
    out = out[:, :, ::stride, 0:(Wout - 1) * stride + 1:stride]
    return out                                      # (N, Cout, Hout, Wout)


def _reference(x_nchw, weight_oihw, conv_bias, gamma, beta, stride, padding):
    """Plain-JAX reference mirroring PyTorch train-mode forward."""
    y = jax.lax.conv_general_dilated(
        x_nchw, weight_oihw, window_strides=(stride, stride),
        padding=[(padding, padding), (padding, padding)],
        dimension_numbers=("NCHW", "OIHW", "NCHW"))
    y = y + conv_bias[None, :, None, None]
    mean = jnp.mean(y, axis=(0, 2, 3), keepdims=True)
    var = jnp.mean(jnp.square(y - mean), axis=(0, 2, 3), keepdims=True)
    y = (y - mean) * jax.lax.rsqrt(var + BN_EPS)
    y = y * gamma[None, :, None, None] + beta[None, :, None, None]
    return jnp.maximum(y, 0.0)


def _run_case(key, n, cin, cout, h, w, stride, padding):
    k_x, k_w, k_cb, k_g, k_b = jax.random.split(key, 5)
    x = jax.random.normal(k_x, (n, cin, h, w), dtype=jnp.float32)
    weight = 0.1 * jax.random.normal(k_w, (cout, cin, 3, 3), dtype=jnp.float32)
    conv_bias = 0.1 * jax.random.normal(k_cb, (cout,), dtype=jnp.float32)
    gamma = 1.0 + 0.1 * jax.random.normal(k_g, (cout,), dtype=jnp.float32)
    beta = 0.1 * jax.random.normal(k_b, (cout,), dtype=jnp.float32)

    # Round to bf16-representable values so the comparison against the f32
    # reference isolates kernel logic from the intended bf16 operand cast.
    x = x.astype(jnp.bfloat16).astype(jnp.float32)
    weight = weight.astype(jnp.bfloat16).astype(jnp.float32)

    fwd = jax.jit(functools.partial(conv3x3_forward,
                                    stride=stride, padding=padding))
    out = fwd(x, weight, conv_bias, gamma, beta)
    out = jax.block_until_ready(out)

    ref = _reference(x, weight, conv_bias, gamma, beta, stride, padding)
    hout = (h + 2 * padding - 3) // stride + 1
    wout = (w + 2 * padding - 3) // stride + 1
    assert out.shape == (n, cout, hout, wout), out.shape
    # Tolerance reflects the (intentional) bf16 storage of the conv intermediate.
    err = float(jnp.max(jnp.abs(out - ref)))
    assert jnp.allclose(out, ref, atol=3e-2, rtol=3e-2), (
        f"mismatch vs reference: max abs err = {err}")


if __name__ == "__main__":
    key = jax.random.PRNGKey(0)
    k1, k2 = jax.random.split(key)
    # Module-default config (stride=1, padding=0); even batch exercises the
    # 2-way TensorCore split and the resident stat accumulators across steps.
    _run_case(k1, n=4, cin=4, cout=8, h=16, w=16, stride=1, padding=0)
    # Strided + padded config with an odd batch (zero-padded dummy image).
    _run_case(k2, n=3, cin=4, cout=8, h=16, w=16, stride=2, padding=1)
    print("KERNEL_OK")
</pallas_src>

<mosaic_0001>
module attributes {stable_mosaic.version = 11 : i64} {
  func.func @_bn_relu_kernel(%arg0: i32, %arg1: memref<4x8x256xbf16, #tpu.memory_space<vmem>>, %arg2: memref<1x8x1xf32, #tpu.memory_space<vmem>>, %arg3: memref<1x8x1xf32, #tpu.memory_space<vmem>>, %arg4: memref<4x8x256xf32, #tpu.memory_space<vmem>>) attributes {dimension_semantics = [#tpu.dimension_semantics<parallel>], iteration_bounds = array<i64: 1>, scalar_prefetch = 0 : i64, scratch_operands = 0 : i64, tpu.core_type = #tpu.core_type<tc>, window_params = [{transform_indices = @transform_0, window_bounds = array<i64: 4, 8, 256>}, {pipeline_mode = #tpu.pipeline_mode<synchronous>, transform_indices = @transform_1, window_bounds = array<i64: 1, 8, 1>}, {pipeline_mode = #tpu.pipeline_mode<synchronous>, transform_indices = @transform_2, window_bounds = array<i64: 1, 8, 1>}, {transform_indices = @transform_3, window_bounds = array<i64: 4, 8, 256>}]} {
    %c0 = arith.constant 0 : index
    %c0_0 = arith.constant 0 : index
    %c0_1 = arith.constant 0 : index
    %0 = vector.load %arg1[%c0, %c0_0, %c0_1] : memref<4x8x256xbf16, #tpu.memory_space<vmem>>, vector<4x8x256xbf16>
    %1 = arith.extf %0 : vector<4x8x256xbf16> to vector<4x8x256xf32>
    %c0_2 = arith.constant 0 : index
    %c0_3 = arith.constant 0 : index
    %c0_4 = arith.constant 0 : index
    %2 = vector.load %arg2[%c0_2, %c0_3, %c0_4] : memref<1x8x1xf32, #tpu.memory_space<vmem>>, vector<1x8x1xf32>
    %3 = vector.broadcast %2 : vector<1x8x1xf32> to vector<4x8x256xf32>
    %4 = arith.mulf %1, %3 : vector<4x8x256xf32>
    %c0_5 = arith.constant 0 : index
    %c0_6 = arith.constant 0 : index
    %c0_7 = arith.constant 0 : index
    %5 = vector.load %arg3[%c0_5, %c0_6, %c0_7] : memref<1x8x1xf32, #tpu.memory_space<vmem>>, vector<1x8x1xf32>
    %6 = vector.broadcast %5 : vector<1x8x1xf32> to vector<4x8x256xf32>
    %7 = arith.addf %4, %6 : vector<4x8x256xf32>
    %cst = arith.constant 0.000000e+00 : f32
    %8 = vector.broadcast %cst : f32 to vector<4x8x256xf32>
    %9 = arith.maximumf %7, %8 : vector<4x8x256xf32>
    %c0_8 = arith.constant 0 : index
    %c0_9 = arith.constant 0 : index
    %c0_10 = arith.constant 0 : index
    %10 = vector.load %arg4[%c0_8, %c0_9, %c0_10] : memref<4x8x256xf32, #tpu.memory_space<vmem>>, vector<4x8x256xf32>
    tpu.vector_store %arg4[%c0_8, %c0_9, %c0_10], %9 {strides = array<i32>} : memref<4x8x256xf32, #tpu.memory_space<vmem>>, vector<4x8x256xf32>,
    return
  }
  func.func @transform_0(%arg0: i32) -> (i32, i32, i32) {
    %c0_i32 = arith.constant 0 : i32
    %c0_i32_0 = arith.constant 0 : i32
    %c0_i32_1 = arith.constant 0 : i32
    return %arg0, %c0_i32, %c0_i32_0 : i32, i32, i32
  }
  func.func @transform_1(%arg0: i32) -> (i32, i32, i32) {
    %c0_i32 = arith.constant 0 : i32
    %c0_i32_0 = arith.constant 0 : i32
    %c0_i32_1 = arith.constant 0 : i32
    %c0_i32_2 = arith.constant 0 : i32
    return %c0_i32, %c0_i32_0, %c0_i32_1 : i32, i32, i32
  }
  func.func @transform_2(%arg0: i32) -> (i32, i32, i32) {
    %c0_i32 = arith.constant 0 : i32
    %c0_i32_0 = arith.constant 0 : i32
    %c0_i32_1 = arith.constant 0 : i32
    %c0_i32_2 = arith.constant 0 : i32
    return %c0_i32, %c0_i32_0, %c0_i32_1 : i32, i32, i32
  }
  func.func @transform_3(%arg0: i32) -> (i32, i32, i32) {
    %c0_i32 = arith.constant 0 : i32
    %c0_i32_0 = arith.constant 0 : i32
    %c0_i32_1 = arith.constant 0 : i32
    return %arg0, %c0_i32, %c0_i32_0 : i32, i32, i32
  }
}

module attributes {stable_mosaic.version = 11 : i64} {
  func.func @_conv_stats_kernel(%arg0: i32, %arg1: i32, %arg2: memref<1x4x384xbf16, #tpu.memory_space<vmem>>, %arg3: memref<9x8x4xbf16, #tpu.memory_space<vmem>>, %arg4: memref<1x256xf32, #tpu.memory_space<vmem>>, %arg5: memref<1x8x256xbf16, #tpu.memory_space<vmem>>, %arg6: memref<1x8x1xf32, #tpu.memory_space<vmem>>, %arg7: memref<1x8x1xf32, #tpu.memory_space<vmem>>) attributes {dimension_semantics = [#tpu.dimension_semantics<parallel>, #tpu.dimension_semantics<arbitrary>], iteration_bounds = array<i64: 2, 2>, scalar_prefetch = 0 : i64, scratch_operands = 0 : i64, tpu.core_type = #tpu.core_type<tc>, window_params = [{transform_indices = @transform_0, window_bounds = array<i64: 1, 4, 384>}, {pipeline_mode = #tpu.pipeline_mode<synchronous>, transform_indices = @transform_1, window_bounds = array<i64: 9, 8, 4>}, {pipeline_mode = #tpu.pipeline_mode<synchronous>, transform_indices = @transform_2, window_bounds = array<i64: 1, 256>}, {transform_indices = @transform_3, window_bounds = array<i64: 1, 8, 256>}, {transform_indices = @transform_4, window_bounds = array<i64: 1, 8, 1>}, {transform_indices = @transform_5, window_bounds = array<i64: 1, 8, 1>}]} {
    %c0_i32 = arith.constant 0 : i32
    %0 = arith.cmpi eq, %arg1, %c0_i32 : i32
    %1 = arith.extui %0 : i1 to i32
    %c0_i32_0 = arith.constant 0 : i32
    %2 = arith.cmpi ne, %1, %c0_i32_0 : i32
    scf.if %2 {
      %cst_67 = arith.constant 0.000000e+00 : f32
      %75 = vector.broadcast %cst_67 : f32 to vector<1x8x1xf32>
      %c0_68 = arith.constant 0 : index
      %c0_69 = arith.constant 0 : index
      %c0_70 = arith.constant 0 : index
      %76 = vector.load %arg6[%c0_68, %c0_69, %c0_70] : memref<1x8x1xf32, #tpu.memory_space<vmem>>, vector<1x8x1xf32>
      tpu.vector_store %arg6[%c0_68, %c0_69, %c0_70], %75 {strides = array<i32>} : memref<1x8x1xf32, #tpu.memory_space<vmem>>, vector<1x8x1xf32>,
      %cst_71 = arith.constant 0.000000e+00 : f32
      %77 = vector.broadcast %cst_71 : f32 to vector<1x8x1xf32>
      %c0_72 = arith.constant 0 : index
      %c0_73 = arith.constant 0 : index
      %c0_74 = arith.constant 0 : index
      %78 = vector.load %arg7[%c0_72, %c0_73, %c0_74] : memref<1x8x1xf32, #tpu.memory_space<vmem>>, vector<1x8x1xf32>
      tpu.vector_store %arg7[%c0_72, %c0_73, %c0_74], %77 {strides = array<i32>} : memref<1x8x1xf32, #tpu.memory_space<vmem>>, vector<1x8x1xf32>,
    } else {
    }
    %c0 = arith.constant 0 : index
    %c0_1 = arith.constant 0 : index
    %c0_2 = arith.constant 0 : index
    %3 = vector.load %arg2[%c0, %c0_1, %c0_2] : memref<1x4x384xbf16, #tpu.memory_space<vmem>>, vector<1x4x256xbf16>
    %4 = vector.shape_cast %3 : vector<1x4x256xbf16> to vector<4x256xbf16>
    %c0_3 = arith.constant 0 : index
    %c0_4 = arith.constant 0 : index
    %c0_5 = arith.constant 0 : index
    %5 = vector.load %arg3[%c0_3, %c0_4, %c0_5] : memref<9x8x4xbf16, #tpu.memory_space<vmem>>, vector<1x8x4xbf16>
    %6 = vector.shape_cast %5 : vector<1x8x4xbf16> to vector<8x4xbf16>
    %cst = arith.constant dense<0.000000e+00> : vector<8x256xf32>
    %7 = tpu.matmul %6, %4, %cst {dimension_numbers = #tpu.dot_dimension_numbers<[1], [0], [0], [1], [0, 0, 1, 1], [], []>} : vector<8x4xbf16>, vector<4x256xbf16>, vector<8x256xf32> -> vector<8x256xf32>
    %c0_6 = arith.constant 0 : index
    %c0_7 = arith.constant 0 : index
    %c1 = arith.constant 1 : index
    %8 = vector.load %arg2[%c0_6, %c0_7, %c1] : memref<1x4x384xbf16, #tpu.memory_space<vmem>>, vector<1x4x256xbf16>
    %9 = vector.shape_cast %8 : vector<1x4x256xbf16> to vector<4x256xbf16>
    %c1_8 = arith.constant 1 : index
    %c0_9 = arith.constant 0 : index
    %c0_10 = arith.constant 0 : index
    %10 = vector.load %arg3[%c1_8, %c0_9, %c0_10] : memref<9x8x4xbf16, #tpu.memory_space<vmem>>, vector<1x8x4xbf16>
    %11 = vector.shape_cast %10 : vector<1x8x4xbf16> to vector<8x4xbf16>
    %cst_11 = arith.constant dense<0.000000e+00> : vector<8x256xf32>
    %12 = tpu.matmul %11, %9, %cst_11 {dimension_numbers = #tpu.dot_dimension_numbers<[1], [0], [0], [1], [0, 0, 1, 1], [], []>} : vector<8x4xbf16>, vector<4x256xbf16>, vector<8x256xf32> -> vector<8x256xf32>
    %13 = arith.addf %7, %12 : vector<8x256xf32>
    %c0_12 = arith.constant 0 : index
    %c0_13 = arith.constant 0 : index
    %c2 = arith.constant 2 : index
    %14 = vector.load %arg2[%c0_12, %c0_13, %c2] : memref<1x4x384xbf16, #tpu.memory_space<vmem>>, vector<1x4x256xbf16>
    %15 = vector.shape_cast %14 : vector<1x4x256xbf16> to vector<4x256xbf16>
    %c2_14 = arith.constant 2 : index
    %c0_15 = arith.constant 0 : index
    %c0_16 = arith.constant 0 : index
    %16 = vector.load %arg3[%c2_14, %c0_15, %c0_16] : memref<9x8x4xbf16, #tpu.memory_space<vmem>>, vector<1x8x4xbf16>
    %17 = vector.shape_cast %16 : vector<1x8x4xbf16> to vector<8x4xbf16>
    %cst_17 = arith.constant dense<0.000000e+00> : vector<8x256xf32>
    %18 = tpu.matmul %17, %15, %cst_17 {dimension_numbers = #tpu.dot_dimension_numbers<[1], [0], [0], [1], [0, 0, 1, 1], [], []>} : vector<8x4xbf16>, vector<4x256xbf16>, vector<8x256xf32> -> vector<8x256xf32>
    %19 = arith.addf %13, %18 : vector<8x256xf32>
    %c0_18 = arith.constant 0 : index
    %c0_19 = arith.constant 0 : index
    %c16 = arith.constant 16 : index
    %20 = vector.load %arg2[%c0_18, %c0_19, %c16] : memref<1x4x384xbf16, #tpu.memory_space<vmem>>, vector<1x4x256xbf16>
    %21 = vector.shape_cast %20 : vector<1x4x256xbf16> to vector<4x256xbf16>
    %c3 = arith.constant 3 : index
    %c0_20 = arith.constant 0 : index
    %c0_21 = arith.constant 0 : index
    %22 = vector.load %arg3[%c3, %c0_20, %c0_21] : memref<9x8x4xbf16, #tpu.memory_space<vmem>>, vector<1x8x4xbf16>
    %23 = vector.shape_cast %22 : vector<1x8x4xbf16> to vector<8x4xbf16>
    %cst_22 = arith.constant dense<0.000000e+00> : vector<8x256xf32>
    %24 = tpu.matmul %23, %21, %cst_22 {dimension_numbers = #tpu.dot_dimension_numbers<[1], [0], [0], [1], [0, 0, 1, 1], [], []>} : vector<8x4xbf16>, vector<4x256xbf16>, vector<8x256xf32> -> vector<8x256xf32>
    %25 = arith.addf %19, %24 : vector<8x256xf32>
    %c0_23 = arith.constant 0 : index
    %c0_24 = arith.constant 0 : index
    %c17 = arith.constant 17 : index
    %26 = vector.load %arg2[%c0_23, %c0_24, %c17] : memref<1x4x384xbf16, #tpu.memory_space<vmem>>, vector<1x4x256xbf16>
    %27 = vector.shape_cast %26 : vector<1x4x256xbf16> to vector<4x256xbf16>
    %c4 = arith.constant 4 : index
    %c0_25 = arith.constant 0 : index
    %c0_26 = arith.constant 0 : index
    %28 = vector.load %arg3[%c4, %c0_25, %c0_26] : memref<9x8x4xbf16, #tpu.memory_space<vmem>>, vector<1x8x4xbf16>
    %29 = vector.shape_cast %28 : vector<1x8x4xbf16> to vector<8x4xbf16>
    %cst_27 = arith.constant dense<0.000000e+00> : vector<8x256xf32>
    %30 = tpu.matmul %29, %27, %cst_27 {dimension_numbers = #tpu.dot_dimension_numbers<[1], [0], [0], [1], [0, 0, 1, 1], [], []>} : vector<8x4xbf16>, vector<4x256xbf16>, vector<8x256xf32> -> vector<8x256xf32>
    %31 = arith.addf %25, %30 : vector<8x256xf32>
    %c0_28 = arith.constant 0 : index
    %c0_29 = arith.constant 0 : index
    %c18 = arith.constant 18 : index
    %32 = vector.load %arg2[%c0_28, %c0_29, %c18] : memref<1x4x384xbf16, #tpu.memory_space<vmem>>, vector<1x4x256xbf16>
    %33 = vector.shape_cast %32 : vector<1x4x256xbf16> to vector<4x256xbf16>
    %c5 = arith.constant 5 : index
    %c0_30 = arith.constant 0 : index
    %c0_31 = arith.constant 0 : index
    %34 = vector.load %arg3[%c5, %c0_30, %c0_31] : memref<9x8x4xbf16, #tpu.memory_space<vmem>>, vector<1x8x4xbf16>
    %35 = vector.shape_cast %34 : vector<1x8x4xbf16> to vector<8x4xbf16>
    %cst_32 = arith.constant dense<0.000000e+00> : vector<8x256xf32>
    %36 = tpu.matmul %35, %33, %cst_32 {dimension_numbers = #tpu.dot_dimension_numbers<[1], [0], [0], [1], [0, 0, 1, 1], [], []>} : vector<8x4xbf16>, vector<4x256xbf16>, vector<8x256xf32> -> vector<8x256xf32>
    %37 = arith.addf %31, %36 : vector<8x256xf32>
    %c0_33 = arith.constant 0 : index
    %c0_34 = arith.constant 0 : index
    %c32 = arith.constant 32 : index
    %38 = vector.load %arg2[%c0_33, %c0_34, %c32] : memref<1x4x384xbf16, #tpu.memory_space<vmem>>, vector<1x4x256xbf16>
    %39 = vector.shape_cast %38 : vector<1x4x256xbf16> to vector<4x256xbf16>
    %c6 = arith.constant 6 : index
    %c0_35 = arith.constant 0 : index
    %c0_36 = arith.constant 0 : index
    %40 = vector.load %arg3[%c6, %c0_35, %c0_36] : memref<9x8x4xbf16, #tpu.memory_space<vmem>>, vector<1x8x4xbf16>
    %41 = vector.shape_cast %40 : vector<1x8x4xbf16> to vector<8x4xbf16>
    %cst_37 = arith.constant dense<0.000000e+00> : vector<8x256xf32>
    %42 = tpu.matmul %41, %39, %cst_37 {dimension_numbers = #tpu.dot_dimension_numbers<[1], [0], [0], [1], [0, 0, 1, 1], [], []>} : vector<8x4xbf16>, vector<4x256xbf16>, vector<8x256xf32> -> vector<8x256xf32>
    %43 = arith.addf %37, %42 : vector<8x256xf32>
    %c0_38 = arith.constant 0 : index
    %c0_39 = arith.constant 0 : index
    %c33 = arith.constant 33 : index
    %44 = vector.load %arg2[%c0_38, %c0_39, %c33] : memref<1x4x384xbf16, #tpu.memory_space<vmem>>, vector<1x4x256xbf16>
    %45 = vector.shape_cast %44 : vector<1x4x256xbf16> to vector<4x256xbf16>
    %c7 = arith.constant 7 : index
    %c0_40 = arith.constant 0 : index
    %c0_41 = arith.constant 0 : index
    %46 = vector.load %arg3[%c7, %c0_40, %c0_41] : memref<9x8x4xbf16, #tpu.memory_space<vmem>>, vector<1x8x4xbf16>
    %47 = vector.shape_cast %46 : vector<1x8x4xbf16> to vector<8x4xbf16>
    %cst_42 = arith.constant dense<0.000000e+00> : vector<8x256xf32>
    %48 = tpu.matmul %47, %45, %cst_42 {dimension_numbers = #tpu.dot_dimension_numbers<[1], [0], [0], [1], [0, 0, 1, 1], [], []>} : vector<8x4xbf16>, vector<4x256xbf16>, vector<8x256xf32> -> vector<8x256xf32>
    %49 = arith.addf %43, %48 : vector<8x256xf32>
    %c0_43 = arith.constant 0 : index
    %c0_44 = arith.constant 0 : index
    %c34 = arith.constant 34 : index
    %50 = vector.load %arg2[%c0_43, %c0_44, %c34] : memref<1x4x384xbf16, #tpu.memory_space<vmem>>, vector<1x4x256xbf16>
    %51 = vector.shape_cast %50 : vector<1x4x256xbf16> to vector<4x256xbf16>
    %c8 = arith.constant 8 : index
    %c0_45 = arith.constant 0 : index
    %c0_46 = arith.constant 0 : index
    %52 = vector.load %arg3[%c8, %c0_45, %c0_46] : memref<9x8x4xbf16, #tpu.memory_space<vmem>>, vector<1x8x4xbf16>
    %53 = vector.shape_cast %52 : vector<1x8x4xbf16> to vector<8x4xbf16>
    %cst_47 = arith.constant dense<0.000000e+00> : vector<8x256xf32>
    %54 = tpu.matmul %53, %51, %cst_47 {dimension_numbers = #tpu.dot_dimension_numbers<[1], [0], [0], [1], [0, 0, 1, 1], [], []>} : vector<8x4xbf16>, vector<4x256xbf16>, vector<8x256xf32> -> vector<8x256xf32>
    %55 = arith.addf %49, %54 : vector<8x256xf32>
    %c0_48 = arith.constant 0 : index
    %c0_49 = arith.constant 0 : index
    %56 = vector.load %arg4[%c0_48, %c0_49] : memref<1x256xf32, #tpu.memory_space<vmem>>, vector<1x256xf32>
    %57 = vector.broadcast %56 : vector<1x256xf32> to vector<8x256xf32>
    %58 = arith.mulf %55, %57 : vector<8x256xf32>
    %59 = vector.shape_cast %58 : vector<8x256xf32> to vector<1x8x256xf32>
    %60 = arith.truncf %59 : vector<1x8x256xf32> to vector<1x8x256xbf16>
    %c0_50 = arith.constant 0 : index
    %c0_51 = arith.constant 0 : index
    %c0_52 = arith.constant 0 : index
    %61 = vector.load %arg5[%c0_50, %c0_51, %c0_52] : memref<1x8x256xbf16, #tpu.memory_space<vmem>>, vector<1x8x256xbf16>
    tpu.vector_store %arg5[%c0_50, %c0_51, %c0_52], %60 {strides = array<i32>} : memref<1x8x256xbf16, #tpu.memory_space<vmem>>, vector<1x8x256xbf16>,
    %c0_53 = arith.constant 0 : index
    %c0_54 = arith.constant 0 : index
    %c0_55 = arith.constant 0 : index
    %62 = vector.load %arg6[%c0_53, %c0_54, %c0_55] : memref<1x8x1xf32, #tpu.memory_space<vmem>>, vector<1x8x1xf32>
    %cst_56 = arith.constant dense<0.000000e+00> : vector<8xf32>
    %63 = vector.multi_reduction <add>, %58, %cst_56 [1] : vector<8x256xf32> to vector<8xf32>
    %64 = vector.shape_cast %63 : vector<8xf32> to vector<8x1xf32>
    %65 = vector.shape_cast %64 : vector<8x1xf32> to vector<1x8x1xf32>
    %66 = arith.addf %62, %65 : vector<1x8x1xf32>
    %c0_57 = arith.constant 0 : index
    %c0_58 = arith.constant 0 : index
    %c0_59 = arith.constant 0 : index
    %67 = vector.load %arg6[%c0_57, %c0_58, %c0_59] : memref<1x8x1xf32, #tpu.memory_space<vmem>>, vector<1x8x1xf32>
    tpu.vector_store %arg6[%c0_57, %c0_58, %c0_59], %66 {strides = array<i32>} : memref<1x8x1xf32, #tpu.memory_space<vmem>>, vector<1x8x1xf32>,
    %c0_60 = arith.constant 0 : index
    %c0_61 = arith.constant 0 : index
    %c0_62 = arith.constant 0 : index
    %68 = vector.load %arg7[%c0_60, %c0_61, %c0_62] : memref<1x8x1xf32, #tpu.memory_space<vmem>>, vector<1x8x1xf32>
    %69 = arith.mulf %58, %58 : vector<8x256xf32>
    %cst_63 = arith.constant dense<0.000000e+00> : vector<8xf32>
    %70 = vector.multi_reduction <add>, %69, %cst_63 [1] : vector<8x256xf32> to vector<8xf32>
    %71 = vector.shape_cast %70 : vector<8xf32> to vector<8x1xf32>
    %72 = vector.shape_cast %71 : vector<8x1xf32> to vector<1x8x1xf32>
    %73 = arith.addf %68, %72 : vector<1x8x1xf32>
    %c0_64 = arith.constant 0 : index
    %c0_65 = arith.constant 0 : index
    %c0_66 = arith.constant 0 : index
    %74 = vector.load %arg7[%c0_64, %c0_65, %c0_66] : memref<1x8x1xf32, #tpu.memory_space<vmem>>, vector<1x8x1xf32>
    tpu.vector_store %arg7[%c0_64, %c0_65, %c0_66], %73 {strides = array<i32>} : memref<1x8x1xf32, #tpu.memory_space<vmem>>, vector<1x8x1xf32>,
    return
  }
  func.func @transform_0(%arg0: i32, %arg1: i32) -> (i32, i32, i32) {
    %c2_i32 = arith.constant 2 : i32
    %0 = arith.muli %arg0, %c2_i32 : i32
    %1 = arith.addi %0, %arg1 : i32
    %c0_i32 = arith.constant 0 : i32
    %c0_i32_0 = arith.constant 0 : i32
    %c0_i32_1 = arith.constant 0 : i32
    return %1, %c0_i32, %c0_i32_0 : i32, i32, i32
  }
  func.func @transform_1(%arg0: i32, %arg1: i32) -> (i32, i32, i32) {
    %c0_i32 = arith.constant 0 : i32
    %c0_i32_0 = arith.constant 0 : i32
    %c0_i32_1 = arith.constant 0 : i32
    %c0_i32_2 = arith.constant 0 : i32
    return %c0_i32, %c0_i32_0, %c0_i32_1 : i32, i32, i32
  }
  func.func @transform_2(%arg0: i32, %arg1: i32) -> (i32, i32) {
    %c0_i32 = arith.constant 0 : i32
    %c0_i32_0 = arith.constant 0 : i32
    %c0_i32_1 = arith.constant 0 : i32
    return %c0_i32, %c0_i32_0 : i32, i32
  }
  func.func @transform_3(%arg0: i32, %arg1: i32) -> (i32, i32, i32) {
    %c2_i32 = arith.constant 2 : i32
    %0 = arith.muli %arg0, %c2_i32 : i32
    %1 = arith.addi %0, %arg1 : i32
    %c0_i32 = arith.constant 0 : i32
    %c0_i32_0 = arith.constant 0 : i32
    %c0_i32_1 = arith.constant 0 : i32
    return %1, %c0_i32, %c0_i32_0 : i32, i32, i32
  }
  func.func @transform_4(%arg0: i32, %arg1: i32) -> (i32, i32, i32) {
    %c0_i32 = arith.constant 0 : i32
    %c0_i32_0 = arith.constant 0 : i32
    %c0_i32_1 = arith.constant 0 : i32
    return %arg0, %c0_i32, %c0_i32_0 : i32, i32, i32
  }
  func.func @transform_5(%arg0: i32, %arg1: i32) -> (i32, i32, i32) {
    %c0_i32 = arith.constant 0 : i32
    %c0_i32_0 = arith.constant 0 : i32
    %c0_i32_1 = arith.constant 0 : i32
    return %arg0, %c0_i32, %c0_i32_0 : i32, i32, i32
  }
}

</mosaic_0001>

<llo_original>
// kernel: conv3x3_forward.3
$region0: #{conv3x3_forward.3}
  #allocation0 [shape = 'u32[]', space=smem, size = 0x4, offset = 0x4, fixed_abs, tag = 'smem constant byte address 0x4 - core index']
  #allocation1 [shape = 'u32[144,128]{1,0:T(1,128)}', space=vmem, size = 0x12000, scoped, tag = 'internal scratch']
  %s0 = inlined_call_operand.vmem [shape: bf16[4,8,256], index: 0, kind: input, shape index: {}]
  %s1 = inlined_call_operand.vmem [shape: f32[1,8,1], index: 1, kind: input, shape index: {}]
  %s2 = inlined_call_operand.vmem [shape: f32[1,8,1], index: 2, kind: input, shape index: {}]
  %s3 = inlined_call_operand.vmem [shape: f32[4,8,256], index: 3, kind: output, shape index: {}]
  %s4 = sld [smem:[#allocation0]]
  $region22: #{conv3x3_forward.3} parent=0
    _
  %s6 = ssub.s32 1, %s4
  %s7 = scalar_select 0, %s6, %s4
  // Predicated region
  $region2: #{conv3x3_forward.3} parent=0 // pred_check
    _
  $region3: #{conv3x3_forward.3} parent=0 // pred_check_branch
    %9 = sbr.rel (0) target = $region5
  $region4: #{conv3x3_forward.3} parent=0 // pred_region
    _
  $region5: #{conv3x3_forward.3} parent=0 // pred_fallthru
    _
  // Predicated region
  $region6: #{conv3x3_forward.3} parent=0 // pred_check
    _
  $region7: #{conv3x3_forward.3} parent=0 // pred_check_branch
    %11 = sbr.rel (0) target = $region9
  $region8: #{conv3x3_forward.3} parent=0 // pred_region
    _
  $region9: #{conv3x3_forward.3} parent=0 // pred_fallthru
    _
  // Predicated region
  $region10: #{conv3x3_forward.3} parent=0 // pred_check
    _
  $region11: #{conv3x3_forward.3} parent=0 // pred_check_branch
    %13 = sbr.rel (0) target = $region13
  $region12: #{conv3x3_forward.3} parent=0 // pred_region
    _
  $region13: #{conv3x3_forward.3} parent=0 // pred_fallthru
    _
  %v14 = vld [vmem:[%s0] sm:$0xff]
  %v15 = vld [vmem:[%s0 + $0x8] sm:$0xff]
  %v16 = vld [vmem:[%s0 + $0x10] sm:$0xff]
  %v17 = vld [vmem:[%s0 + $0x18] sm:$0xff]
  %v18 = vunpack.c.l.bf16 %v14
  %v19 = vunpack.c.h.bf16 %v14
  %v20 = vunpack.c.l.bf16 %v15
  %v21 = vunpack.c.h.bf16 %v15
  %v22 = vunpack.c.l.bf16 %v16
  %v23 = vunpack.c.h.bf16 %v16
  %v24 = vunpack.c.l.bf16 %v17
  %v25 = vunpack.c.h.bf16 %v17
  %v26 = vld [vmem:[%s1] sm:$0xff]
  %28 = vset.pattern.permute.xlu0 0
  %29 = vperm.xlu0 %28, %v26
  %v30 = vpop.permute.xlu0 %29
  %v32 = vmul.f32 %v18, %v30
  %v33 = vmul.f32 %v19, %v30
  %v34 = vmul.f32 %v20, %v30
  %v35 = vmul.f32 %v21, %v30
  %v36 = vmul.f32 %v22, %v30
  %v37 = vmul.f32 %v23, %v30
  %v38 = vmul.f32 %v24, %v30
  %v39 = vmul.f32 %v25, %v30
  %v40 = vld [vmem:[%s2] sm:$0xff]
  %42 = vset.pattern.permute.xlu0 0
  %43 = vperm.xlu0 %42, %v40
  %v44 = vpop.permute.xlu0 %43
  %v46 = vadd.f32 %v32, %v44
  %v47 = vadd.f32 %v33, %v44
  %v48 = vadd.f32 %v34, %v44
  %v49 = vadd.f32 %v35, %v44
  %v50 = vadd.f32 %v36, %v44
  %v51 = vadd.f32 %v37, %v44
  %v52 = vadd.f32 %v38, %v44
  %v53 = vadd.f32 %v39, %v44
  %v54 = vmax.f32 %v46, 0.0
  %v55 = vmax.f32 %v47, 0.0
  %v56 = vmax.f32 %v48, 0.0
  %v57 = vmax.f32 %v49, 0.0
  %v58 = vmax.f32 %v50, 0.0
  %v59 = vmax.f32 %v51, 0.0
  %v60 = vmax.f32 %v52, 0.0
  %v61 = vmax.f32 %v53, 0.0
  %62 = vst [vmem:[%s3] sm:$0xff] %v54
  %63 = vst [vmem:[%s3 + $0x8] sm:$0xff] %v55
  %64 = vst [vmem:[%s3 + $0x10] sm:$0xff] %v56
  %65 = vst [vmem:[%s3 + $0x18] sm:$0xff] %v57
  %66 = vst [vmem:[%s3 + $0x20] sm:$0xff] %v58
  %67 = vst [vmem:[%s3 + $0x28] sm:$0xff] %v59
  %68 = vst [vmem:[%s3 + $0x30] sm:$0xff] %v60
  %69 = vst [vmem:[%s3 + $0x38] sm:$0xff] %v61
  // Predicated region
  $region14: #{conv3x3_forward.3} parent=0 // pred_check
    _
  $region15: #{conv3x3_forward.3} parent=0 // pred_check_branch
    %71 = sbr.rel (0) target = $region17
  $region16: #{conv3x3_forward.3} parent=0 // pred_region
    _
  $region17: #{conv3x3_forward.3} parent=0 // pred_fallthru
    _
  // Predicated region
  $region18: #{conv3x3_forward.3} parent=0 // pred_check
    _
  $region19: #{conv3x3_forward.3} parent=0 // pred_check_branch
    %73 = sbr.rel (0) target = $region21
  $region20: #{conv3x3_forward.3} parent=0 // pred_region
    _
  $region21: #{conv3x3_forward.3} parent=0 // pred_fallthru
    _

// kernel: conv3x3_forward.2
$region0: #{conv3x3_forward.2}
  #allocation0 [shape = 'u32[]', space=smem, size = 0x4, offset = 0x4, fixed_abs, tag = 'smem constant byte address 0x4 - core index']
  #allocation1 [shape = 'u32[144,128]{1,0:T(1,128)}', space=vmem, size = 0x12000, scoped, tag = 'internal scratch']
  %s0 = inlined_call_operand.vmem [shape: bf16[4,4,384], index: 0, kind: input, shape index: {}]
  %s1 = inlined_call_operand.vmem [shape: bf16[9,8,4], index: 1, kind: input, shape index: {}]
  %s2 = inlined_call_operand.vmem [shape: f32[1,256], index: 2, kind: input, shape index: {}]
  %s3 = inlined_call_operand.vmem [shape: bf16[4,8,256], index: 3, kind: output, shape index: {0}]
  %s4 = inlined_call_operand.vmem [shape: f32[2,8,1], index: 4, kind: output, shape index: {1}]
  %s5 = inlined_call_operand.vmem [shape: f32[2,8,1], index: 5, kind: output, shape index: {2}]
  %6 = xla_tuple %s3, %s4, %s5
  %s7 = sld [smem:[#allocation0]]
  $region65: #{conv3x3_forward.2} parent=0
    _
  %s9 = ssub.s32 1, %s7
  %s10 = scalar_select 0, %s9, %s7
  loop: start=0, step=1, limit=6
  $region2: #{conv3x3_forward.2} parent=0 // loop_pre_header
    _
  $region3: #{conv3x3_forward.2} parent=0 // loop_header
    %s12 = sphi 0, %s16
    %p13 = scmp.ge.s32.totalorder %s12, 6
    %s19 = sphi 0, %s31
    %s20 = sphi 0, %s27
    %s21 = sphi 0, %s19
    %s22 = sphi 0, %s20
    %s23 = sphi 0, %s21
    %s24 = sphi 0, %s22
    %s38 = sphi 0, %s40
    %s41 = sphi 0, %s38
    %s42 = sphi 0, %s41
    %s58 = sphi 0, %s42
    %s62 = sphi 0, %s62
    %s64 = sphi 0, %s62
    %s65 = sphi 0, %s64
    %s79 = sphi 0, %s65
    %s83 = sphi 0, %s83
    %s85 = sphi 0, %s83
    %s86 = sphi 0, %s85
    %s100 = sphi 0, %s86
    %s110 = sphi 0, %s112
    %s113 = sphi 0, %s110
    %s114 = sphi 0, %s113
    %s130 = sphi 0, %s114
    %s136 = sphi 0, %s138
    %s139 = sphi 0, %s136
    %s140 = sphi 0, %s139
    %s156 = sphi 0, %s140
    %s162 = sphi 0, %s164
    %s165 = sphi 0, %s162
    %s166 = sphi 0, %s165
    %s182 = sphi 0, %s166
  $region4: #{conv3x3_forward.2} parent=0 // loop_header_branch
    %15 = sbr.rel (%p13) target = $region8
  $region5: #{conv3x3_forward.2} parent=0 // loop_body
    %s17 = ssub.s32 %s12, 1
    %s18 = ssub.s32 %s12, 2
    %s25 = sadd.s32 1, %s20
    %p26 = scmp.ge.s32.totalorder %s25, 2
    %s27 = scalar_select %p26, 0, %s25
    %s28 = sadd.s32 1, %s19
    %s29 = scalar_select %p26, %s28, %s19
    %p30 = scmp.ge.s32.totalorder %s29, 2
    %s31 = scalar_select %p30, 0, %s29
    %s32 = smul.u32 %s19, 2
    %s33 = sadd.s32 %s32, %s20
    %s34 = smul.u32 %s31, 2
    %s35 = sadd.s32 %s34, %s27
    %s36 = ssub.s32 %s33, %s35
    %p37 = scmp.eq.s32.totalorder %s36, 0
    %s39 = sadd.s32 %s38, 1
    %s40 = scalar_select %p37, %s38, %s39
    %p43 = pneg %p37
    %p44 = scmp.eq.s32.totalorder %s12, 3
    %p45 = por %p43, %p44
    %p46 = scmp.ne.s32.totalorder %s38, %s41
    %p47 = scmp.eq.s32.totalorder %s12, 0
    %p48 = por %p46, %p47
    %p49 = scmp.ne.s32.totalorder %s38, %s41
    %p50 = scmp.eq.s32.totalorder %s17, 3
    %p51 = por %p49, %p50
    %p52 = scmp.ne.s32.totalorder %s41, %s42
    %p53 = scmp.eq.s32.totalorder %s17, 0
    %p54 = por %p52, %p53
    %p55 = scmp.ne.s32.totalorder %s41, %s42
    %p56 = scmp.eq.s32.totalorder %s18, 3
    %p57 = por %p55, %p56
    %p59 = scmp.ne.s32.totalorder %s42, %s58
    %p60 = scmp.eq.s32.totalorder %s18, 0
    %p61 = por %p59, %p60
    %s63 = sadd.s32 %s62, 1
    %p66 = scmp.eq.s32.totalorder %s12, 3
    %p67 = scmp.ne.s32.totalorder %s62, %s64
    %p68 = scmp.eq.s32.totalorder %s12, 0
    %p69 = por %p67, %p68
    %p70 = scmp.ne.s32.totalorder %s62, %s64
    %p71 = scmp.eq.s32.totalorder %s17, 3
    %p72 = por %p70, %p71
    %p73 = scmp.ne.s32.totalorder %s64, %s65
    %p74 = scmp.eq.s32.totalorder %s17, 0
    %p75 = por %p73, %p74
    %p76 = scmp.ne.s32.totalorder %s64, %s65
    %p77 = scmp.eq.s32.totalorder %s18, 3
    %p78 = por %p76, %p77
    %p80 = scmp.ne.s32.totalorder %s65, %s79
    %p81 = scmp.eq.s32.totalorder %s18, 0
    %p82 = por %p80, %p81
    %s84 = sadd.s32 %s83, 1
    %p87 = scmp.eq.s32.totalorder %s12, 3
    %p88 = scmp.ne.s32.totalorder %s83, %s85
    %p89 = scmp.eq.s32.totalorder %s12, 0
    %p90 = por %p88, %p89
    %p91 = scmp.ne.s32.totalorder %s83, %s85
    %p92 = scmp.eq.s32.totalorder %s17, 3
    %p93 = por %p91, %p92
    %p94 = scmp.ne.s32.totalorder %s85, %s86
    %p95 = scmp.eq.s32.totalorder %s17, 0
    %p96 = por %p94, %p95
    %p97 = scmp.ne.s32.totalorder %s85, %s86
    %p98 = scmp.eq.s32.totalorder %s18, 3
    %p99 = por %p97, %p98
    %p101 = scmp.ne.s32.totalorder %s86, %s100
    %p102 = scmp.eq.s32.totalorder %s18, 0
    %p103 = por %p101, %p102
    %s104 = smul.u32 %s19, 2
    %s105 = sadd.s32 %s104, %s20
    %s106 = smul.u32 %s31, 2
    %s107 = sadd.s32 %s106, %s27
    %s108 = ssub.s32 %s105, %s107
    %p109 = scmp.eq.s32.totalorder %s108, 0
    %s111 = sadd.s32 %s110, 1
    %s112 = scalar_select %p109, %s110, %s111
    %p115 = pneg %p109
    %p116 = scmp.eq.s32.totalorder %s12, 3
    %p117 = por %p115, %p116
    %p118 = scmp.ne.s32.totalorder %s110, %s113
    %p119 = scmp.eq.s32.totalorder %s12, 0
    %p120 = por %p118, %p119
    %p121 = scmp.ne.s32.totalorder %s110, %s113
    %p122 = scmp.eq.s32.totalorder %s17, 3
    %p123 = por %p121, %p122
    %p124 = scmp.ne.s32.totalorder %s113, %s114
    %p125 = scmp.eq.s32.totalorder %s17, 0
    %p126 = por %p124, %p125
    %p127 = scmp.ne.s32.totalorder %s113, %s114
    %p128 = scmp.eq.s32.totalorder %s18, 3
    %p129 = por %p127, %p128
    %p131 = scmp.ne.s32.totalorder %s114, %s130
    %p132 = scmp.eq.s32.totalorder %s18, 0
    %p133 = por %p131, %p132
    %s134 = ssub.s32 %s19, %s31
    %p135 = scmp.eq.s32.totalorder %s134, 0
    %s137 = sadd.s32 %s136, 1
    %s138 = scalar_select %p135, %s136, %s137
    %p141 = pneg %p135
    %p142 = scmp.eq.s32.totalorder %s12, 3
    %p143 = por %p141, %p142
    %p144 = scmp.ne.s32.totalorder %s136, %s139
    %p145 = scmp.eq.s32.totalorder %s12, 0
    %p146 = por %p144, %p145
    %p147 = scmp.ne.s32.totalorder %s136, %s139
    %p148 = scmp.eq.s32.totalorder %s17, 3
    %p149 = por %p147, %p148
    %p150 = scmp.ne.s32.totalorder %s139, %s140
    %p151 = scmp.eq.s32.totalorder %s17, 0
    %p152 = por %p150, %p151
    %p153 = scmp.ne.s32.totalorder %s139, %s140
    %p154 = scmp.eq.s32.totalorder %s18, 3
    %p155 = por %p153, %p154
    %p157 = scmp.ne.s32.totalorder %s140, %s156
    %p158 = scmp.eq.s32.totalorder %s18, 0
    %p159 = por %p157, %p158
    %s160 = ssub.s32 %s19, %s31
    %p161 = scmp.eq.s32.totalorder %s160, 0
    %s163 = sadd.s32 %s162, 1
    %s164 = scalar_select %p161, %s162, %s163
    %p167 = pneg %p161
    %p168 = scmp.eq.s32.totalorder %s12, 3
    %p169 = por %p167, %p168
    %p170 = scmp.ne.s32.totalorder %s162, %s165
    %p171 = scmp.eq.s32.totalorder %s12, 0
    %p172 = por %p170, %p171
    %p173 = scmp.ne.s32.totalorder %s162, %s165
    %p174 = scmp.eq.s32.totalorder %s17, 3
    %p175 = por %p173, %p174
    %p176 = scmp.ne.s32.totalorder %s165, %s166
    %p177 = scmp.eq.s32.totalorder %s17, 0
    %p178 = por %p176, %p177
    %p179 = scmp.ne.s32.totalorder %s165, %s166
    %p180 = scmp.eq.s32.totalorder %s18, 3
    %p181 = por %p179, %p180
    %p183 = scmp.ne.s32.totalorder %s166, %s182
    %p184 = scmp.eq.s32.totalorder %s18, 0
    %p185 = por %p183, %p184
    %p186 = scmp.le.s32.totalorder 1, %s12
    %p187 = scmp.lt.s32.totalorder %s12, 5
    %p188 = pnand %p186, %p187
    %p189 = pneg %p188
    // Predicated region
    $region9: #{conv3x3_forward.2} parent=5 // pred_check
      _
    $region10: #{conv3x3_forward.2} parent=5 // pred_check_branch
      %191 = sbr.rel (%p188) target = $region12
    $region11: #{conv3x3_forward.2} parent=5 // pred_region
      %s192 = ssub.s32 %s12, 1
      // Predicated region
      $region13: #{conv3x3_forward.2} parent=11 // pred_check
        %p193 = pneg %p75
      $region14: #{conv3x3_forward.2} parent=11 // pred_check_branch
        %195 = sbr.rel (%p193) target = $region16
      $region15: #{conv3x3_forward.2} parent=11 // pred_region
        _
      $region16: #{conv3x3_forward.2} parent=11 // pred_fallthru
        _
      // Predicated region
      $region17: #{conv3x3_forward.2} parent=11 // pred_check
        %p196 = pneg %p96
      $region18: #{conv3x3_forward.2} parent=11 // pred_check_branch
        %198 = sbr.rel (%p196) target = $region20
      $region19: #{conv3x3_forward.2} parent=11 // pred_region
        _
      $region20: #{conv3x3_forward.2} parent=11 // pred_fallthru
        _
    $region12: #{conv3x3_forward.2} parent=5 // pred_fallthru
      _
    %p199 = scmp.lt.s32.totalorder %s12, 4
    // Predicated region
    $region21: #{conv3x3_forward.2} parent=5 // pred_check
      %p200 = pneg %p199
    $region22: #{conv3x3_forward.2} parent=5 // pred_check_branch
      %202 = sbr.rel (%p200) target = $region24
    $region23: #{conv3x3_forward.2} parent=5 // pred_region
      // Predicated region
      $region25: #{conv3x3_forward.2} parent=23 // pred_check
        %p203 = pneg %p48
      $region26: #{conv3x3_forward.2} parent=23 // pred_check_branch
        %205 = sbr.rel (%p203) target = $region28
      $region27: #{conv3x3_forward.2} parent=23 // pred_region
        %s206 = smul.u32 %s19, 2
        %s207 = sadd.s32 %s206, %s20
        %p208 = scmp.lt.s32.totalorder %s207, 3
        %s209 = scalar_select %p208, %s207, 3
        %s210 = smul.addr %s209, 3
        %s211 = smul.addr %s210, 2
        %s212 = scalar_lea.vmem %s0, %s211
        %s213 = smul.u32 %s19, 2
        %s214 = sadd.s32 %s213, %s20
      $region28: #{conv3x3_forward.2} parent=23 // pred_fallthru
        _
    $region24: #{conv3x3_forward.2} parent=5 // pred_fallthru
      _
    %p215 = scmp.le.s32.totalorder 1, %s12
    %p216 = scmp.lt.s32.totalorder %s12, 5
    %p217 = pnand %p215, %p216
    %p218 = pneg %p217
    // Predicated region
    $region29: #{conv3x3_forward.2} parent=5 // pred_check
      _
    $region30: #{conv3x3_forward.2} parent=5 // pred_check_branch
      %220 = sbr.rel (%p217) target = $region32
    $region31: #{conv3x3_forward.2} parent=5 // pred_region
      %s221 = ssub.s32 %s12, 1
      %s222 = smul.u32 %s21, 2
      %s223 = sadd.s32 %s222, %s22
      %p224 = scmp.lt.s32.totalorder %s223, 3
      %s225 = scalar_select %p224, %s223, 3
      %s226 = smul.addr %s225, 3
      %s227 = smul.addr %s226, 2
      %s228 = scalar_lea.vmem %s0, %s227
      %p229 = pneg %p54
      %p230 = pneg %p51
      %p231 = pneg %p75
      %p232 = pneg %p72
      %p233 = pneg %p96
      %p234 = pneg %p93
      %p235 = pneg %p126
      %p236 = pneg %p123
      %s237 = smul.u32 %s21, 2
      %s238 = sadd.s32 %s237, %s22
      %p239 = scmp.lt.s32.totalorder %s238, 3
      %s240 = scalar_select %p239, %s238, 3
      %s241 = smul.addr %s240, 2
      %s242 = smul.addr %s241, 4
      %s243 = scalar_lea.vmem %s3, %s242
      %p244 = pneg %p152
      %p245 = pneg %p149
      %p246 = scmp.lt.s32.totalorder %s21, 1
      %s247 = scalar_select %p246, %s21, 1
      %s248 = smul.addr %s247, 8
      %s249 = scalar_lea.vmem %s4, %s248
      %p250 = pneg %p178
      %p251 = pneg %p175
      %p252 = scmp.lt.s32.totalorder %s21, 1
      %s253 = scalar_select %p252, %s21, 1
      %s254 = smul.addr %s253, 8
      %s255 = scalar_lea.vmem %s5, %s254
      %s256 = smul.u32 %s21, 2
      %s257 = sadd.s32 %s256, %s22
      %p258 = scmp.lt.s32.totalorder %s257, 3
      %s259 = scalar_select %p258, %s257, 3
      %s260 = smul.addr %s259, 3
      %s261 = smul.addr %s260, 2
      %s262 = scalar_lea.vmem %s0, %s261
      %s263 = smul.u32 %s21, 2
      %s264 = sadd.s32 %s263, %s22
      %s265 = smul.u32 %s21, 2
      %s266 = sadd.s32 %s265, %s22
      %p267 = scmp.lt.s32.totalorder %s266, 3
      %s268 = scalar_select %p267, %s266, 3
      %s269 = smul.addr %s268, 2
      %s270 = smul.addr %s269, 4
      %s271 = scalar_lea.vmem %s3, %s270
      %s272 = smul.u32 %s21, 2
      %s273 = sadd.s32 %s272, %s22
      %p274 = scmp.lt.s32.totalorder %s21, 1
      %s275 = scalar_select %p274, %s21, 1
      %s276 = smul.addr %s275, 8
      %s277 = scalar_lea.vmem %s4, %s276
      %p278 = scmp.lt.s32.totalorder %s21, 1
      %s279 = scalar_select %p278, %s21, 1
      %s280 = smul.addr %s279, 8
      %s281 = scalar_lea.vmem %s5, %s280
      %p283 = scmp.eq.s32.totalorder %s22, 0
      // Predicated region
      $region33: #{conv3x3_forward.2} parent=31 // pred_check
        %p284 = pneg %p283
      $region34: #{conv3x3_forward.2} parent=31 // pred_check_branch
        %286 = sbr.rel (%p284) target = $region36
      $region35: #{conv3x3_forward.2} parent=31 // pred_region
        %vm287 = vcmask 7168
        %288 = vst.msk [vmem:[%s277] sm:$0xff] %vm287, 0.0
        %289 = vst.msk [vmem:[%s281] sm:$0xff] %vm287, 0.0
      $region36: #{conv3x3_forward.2} parent=31 // pred_fallthru
        _
      %v290 = vld [vmem:[%s262] sm:$0xf]
      %v291 = vld [vmem:[%s1] sm:$0xf]
      %v292 = vld [vmem:[%s262] sm:$0x3f]
      %s293 = scalar_lea.vmem %s1, 4
      %v294 = vld [vmem:[%s293] sm:$0xf]
      %v296 = vcombine.high %v292, %v292
      %v298 = vunpack.c.l.s4 1983009808
      %v299 = vunpack.c.0.s8 %v298
      %v300 = vlaneseq
      %v301 = vshrl.u32 %v300, 7
      %v302 = vsub.s32 %v299, %v301
      %v303 = vrot.slane %v292, %v302
      %v305 = vunpack.c.l.s4 1983009808
      %v306 = vunpack.c.0.s8 %v305
      %v307 = vlaneseq
      %v308 = vshrl.u32 %v307, 7
      %v309 = vsub.s32 %v306, %v308
      %v310 = vrot.slane %v296, %v309
      %v311 = vcombine.high %v303, %v303
      %312 = vrot.lane.b32.xlu0 %v303, 127
      %v313 = vpop.permute.xlu0 %312
      %314 = vrot.lane.b32.xlu0 %v311, 127
      %v315 = vpop.permute.xlu0 %314
      %316 = vrot.lane.b32.xlu0 %v310, 127
      %v317 = vpop.permute.xlu0 %316
      %vm318 = vcmask 1039360
      %v319 = vsel %vm318, %v313, %v315
      %v320 = vsel %vm318, %v315, %v317
      %vm321 = vcmask 31744
      %v323 = vsel %vm321, %v294, 0
      %vm325 = vcmask 1041408
      %v327 = vsel %vm325, %v319, 0
      %v330 = vsel %vm325, %v320, 0
      %332 = vmatprep.subr.bf16.mxu0 %v330
      %333 = vmatpush1.bf16.msra.mxu0 %v327
      %334 = vmatprep.subr.bf16.mxu0 0
      %335 = vmatpush1.bf16.msra.mxu0 0
      %336 = vmatprep.subr.bf16.mxu0 0
      %337 = vmatpush1.bf16.msra.mxu0 0
      %338 = vmatprep.subr.bf16.mxu0 0
      %339 = vmatpush1.bf16.msra.mxu0 0
      %340 = vmatprep.subr.bf16.mxu0 0
      %341 = vmatpush1.bf16.msra.mxu0 0
      %342 = vmatprep.subr.bf16.mxu0 0
      %343 = vmatpush1.bf16.msra.mxu0 0
      %344 = vmatprep.subr.bf16.mxu0 0
      %345 = vmatpush1.bf16.msra.mxu0 0
      %346 = vmatprep.subr.bf16.mxu0 0
      %347 = vmatpush1.bf16.msra.mxu0 0
      %348 = vmatprep.subr.bf16.mxu0 0
      %349 = vmatpush1.bf16.msra.mxu0 0
      %350 = vmatprep.subr.bf16.mxu0 0
      %351 = vmatpush1.bf16.msra.mxu0 0
      %352 = vmatprep.subr.bf16.mxu0 0
      %353 = vmatpush1.bf16.msra.mxu0 0
      %354 = vmatprep.subr.bf16.mxu0 0
      %355 = vmatpush1.bf16.msra.mxu0 0
      %356 = vmatprep.subr.bf16.mxu0 0
      %357 = vmatpush1.bf16.msra.mxu0 0
      %358 = vmatprep.subr.bf16.mxu0 0
      %359 = vmatpush1.bf16.msra.mxu0 0
      %360 = vmatprep.subr.bf16.mxu0 0
      %361 = vmatpush1.bf16.msra.mxu0 0
      %362 = vmatprep.subr.bf16.mxu0 0
      %363 = vmatpush1.bf16.msra.mxu0 0
      %364 = vmatprep.mubr.bf16.mxu0 0
      %365 = vmatmul.mubr.bf16.gmra.mrb[0].mxu0 %v323
      %v366 = vpop.f32.mrb[0].mxu0
      %v367 = vadd.f32 0.0, %v366
      %v368 = vpop.f32.mrb[0].mxu0
      %v369 = vadd.f32 0.0, %v368
      %v370 = vpop.f32.mrb[0].mxu0
      %v371 = vpop.f32.mrb[0].mxu0
      %372 = vdwg.mxu0
      %v375 = vunpack.c.l.s4 1983009808
      %v376 = vunpack.c.0.s8 %v375
      %v377 = vlaneseq
      %v378 = vshrl.u32 %v377, 7
      %v379 = vsub.s32 %v376, %v378
      %v380 = vrot.slane %v290, %v379
      %v381 = vcombine.high %v380, %v380
      %v383 = vsel %vm321, %v291, 0
      %v386 = vsel %vm325, %v380, 0
      %v389 = vsel %vm325, %v381, 0
      %391 = vmatprep.subr.bf16.mxu0 %v389
      %392 = vmatpush1.bf16.msra.mxu0 %v386
      %393 = vmatprep.subr.bf16.mxu0 0
      %394 = vmatpush1.bf16.msra.mxu0 0
      %395 = vmatprep.subr.bf16.mxu0 0
      %396 = vmatpush1.bf16.msra.mxu0 0
      %397 = vmatprep.subr.bf16.mxu0 0
      %398 = vmatpush1.bf16.msra.mxu0 0
      %399 = vmatprep.subr.bf16.mxu0 0
      %400 = vmatpush1.bf16.msra.mxu0 0
      %401 = vmatprep.subr.bf16.mxu0 0
      %402 = vmatpush1.bf16.msra.mxu0 0
      %403 = vmatprep.subr.bf16.mxu0 0
      %404 = vmatpush1.bf16.msra.mxu0 0
      %405 = vmatprep.subr.bf16.mxu0 0
      %406 = vmatpush1.bf16.msra.mxu0 0
      %407 = vmatprep.subr.bf16.mxu0 0
      %408 = vmatpush1.bf16.msra.mxu0 0
      %409 = vmatprep.subr.bf16.mxu0 0
      %410 = vmatpush1.bf16.msra.mxu0 0
      %411 = vmatprep.subr.bf16.mxu0 0
      %412 = vmatpush1.bf16.msra.mxu0 0
      %413 = vmatprep.subr.bf16.mxu0 0
      %414 = vmatpush1.bf16.msra.mxu0 0
      %415 = vmatprep.subr.bf16.mxu0 0
      %416 = vmatpush1.bf16.msra.mxu0 0
      %417 = vmatprep.subr.bf16.mxu0 0
      %418 = vmatpush1.bf16.msra.mxu0 0
      %419 = vmatprep.subr.bf16.mxu0 0
      %420 = vmatpush1.bf16.msra.mxu0 0
      %421 = vmatprep.subr.bf16.mxu0 0
      %422 = vmatpush1.bf16.msra.mxu0 0
      %423 = vmatprep.mubr.bf16.mxu0 0
      %424 = vmatmul.mubr.bf16.gmra.mrb[0].mxu0 %v383
      %v425 = vpop.f32.mrb[0].mxu0
      %v426 = vadd.f32 %v367, %v425
      %v427 = vpop.f32.mrb[0].mxu0
      %v428 = vadd.f32 %v369, %v427
      %v429 = vpop.f32.mrb[0].mxu0
      %v430 = vpop.f32.mrb[0].mxu0
      %431 = vdwg.mxu0
      %v432 = vld [vmem:[%s262] sm:$0x3f]
      %s433 = scalar_lea.vmem %s1, 8
      %v434 = vld [vmem:[%s433] sm:$0xf]
      %v436 = vcombine.high %v432, %v432
      %v438 = vunpack.c.l.s4 1983009808
      %v439 = vunpack.c.0.s8 %v438
      %v440 = vlaneseq
      %v441 = vshrl.u32 %v440, 7
      %v442 = vsub.s32 %v439, %v441
      %v443 = vrot.slane %v432, %v442
      %v445 = vunpack.c.l.s4 1983009808
      %v446 = vunpack.c.0.s8 %v445
      %v447 = vlaneseq
      %v448 = vshrl.u32 %v447, 7
      %v449 = vsub.s32 %v446, %v448
      %v450 = vrot.slane %v436, %v449
      %v451 = vcombine.high %v443, %v443
      %452 = vrot.lane.b32.xlu0 %v443, 126
      %v453 = vpop.permute.xlu0 %452
      %454 = vrot.lane.b32.xlu0 %v451, 126
      %v455 = vpop.permute.xlu0 %454
      %456 = vrot.lane.b32.xlu0 %v450, 126
      %v457 = vpop.permute.xlu0 %456
      %vm458 = vcmask 1031168
      %v459 = vsel %vm458, %v453, %v455
      %v460 = vsel %vm458, %v455, %v457
      %v462 = vsel %vm321, %v434, 0
      %v465 = vsel %vm325, %v459, 0
      %v468 = vsel %vm325, %v460, 0
      %470 = vmatprep.subr.bf16.mxu0 %v468
      %471 = vmatpush1.bf16.msra.mxu0 %v465
      %472 = vmatprep.subr.bf16.mxu0 0
      %473 = vmatpush1.bf16.msra.mxu0 0
      %474 = vmatprep.subr.bf16.mxu0 0
      %475 = vmatpush1.bf16.msra.mxu0 0
      %476 = vmatprep.subr.bf16.mxu0 0
      %477 = vmatpush1.bf16.msra.mxu0 0
      %478 = vmatprep.subr.bf16.mxu0 0
      %479 = vmatpush1.bf16.msra.mxu0 0
      %480 = vmatprep.subr.bf16.mxu0 0
      %481 = vmatpush1.bf16.msra.mxu0 0
      %482 = vmatprep.subr.bf16.mxu0 0
      %483 = vmatpush1.bf16.msra.mxu0 0
      %484 = vmatprep.subr.bf16.mxu0 0
      %485 = vmatpush1.bf16.msra.mxu0 0
      %486 = vmatprep.subr.bf16.mxu0 0
      %487 = vmatpush1.bf16.msra.mxu0 0
      %488 = vmatprep.subr.bf16.mxu0 0
      %489 = vmatpush1.bf16.msra.mxu0 0
      %490 = vmatprep.subr.bf16.mxu0 0
      %491 = vmatpush1.bf16.msra.mxu0 0
      %492 = vmatprep.subr.bf16.mxu0 0
      %493 = vmatpush1.bf16.msra.mxu0 0
      %494 = vmatprep.subr.bf16.mxu0 0
      %495 = vmatpush1.bf16.msra.mxu0 0
      %496 = vmatprep.subr.bf16.mxu0 0
      %497 = vmatpush1.bf16.msra.mxu0 0
      %498 = vmatprep.subr.bf16.mxu0 0
      %499 = vmatpush1.bf16.msra.mxu0 0
      %500 = vmatprep.subr.bf16.mxu0 0
      %501 = vmatpush1.bf16.msra.mxu0 0
      %502 = vmatprep.mubr.bf16.mxu0 0
      %503 = vmatmul.mubr.bf16.gmra.mrb[0].mxu0 %v462
      %v504 = vpop.f32.mrb[0].mxu0
      %v505 = vadd.f32 0.0, %v504
      %v506 = vpop.f32.mrb[0].mxu0
      %v507 = vadd.f32 0.0, %v506
      %v508 = vpop.f32.mrb[0].mxu0
      %v509 = vpop.f32.mrb[0].mxu0
      %510 = vdwg.mxu0
      %v511 = vadd.f32 %v426, %v505
      %v512 = vadd.f32 %v428, %v507
      %v513 = vld [vmem:[%s262] sm:$0x3f]
      %s514 = scalar_lea.vmem %s1, 12
      %v515 = vld [vmem:[%s514] sm:$0xf]
      %v517 = vcombine.high %v513, %v513
      %v519 = vunpack.c.l.s4 1983009808
      %v520 = vunpack.c.0.s8 %v519
      %v521 = vlaneseq
      %v522 = vshrl.u32 %v521, 7
      %v523 = vsub.s32 %v520, %v522
      %v524 = vrot.slane %v513, %v523
      %v526 = vunpack.c.l.s4 1983009808
      %v527 = vunpack.c.0.s8 %v526
      %v528 = vlaneseq
      %v529 = vshrl.u32 %v528, 7
      %v530 = vsub.s32 %v527, %v529
      %v531 = vrot.slane %v517, %v530
      %v532 = vcombine.high %v524, %v524
      %533 = vrot.lane.b32.xlu0 %v524, 112
      %v534 = vpop.permute.xlu0 %533
      %535 = vrot.lane.b32.xlu0 %v532, 112
      %v536 = vpop.permute.xlu0 %535
      %537 = vrot.lane.b32.xlu0 %v531, 112
      %v538 = vpop.permute.xlu0 %537
      %vm539 = vcmask 916480
      %v540 = vsel %vm539, %v534, %v536
      %v541 = vsel %vm539, %v536, %v538
      %v543 = vsel %vm321, %v515, 0
      %v546 = vsel %vm325, %v540, 0
      %v549 = vsel %vm325, %v541, 0
      %551 = vmatprep.subr.bf16.mxu0 %v549
      %552 = vmatpush1.bf16.msra.mxu0 %v546
      %553 = vmatprep.subr.bf16.mxu0 0
      %554 = vmatpush1.bf16.msra.mxu0 0
      %555 = vmatprep.subr.bf16.mxu0 0
      %556 = vmatpush1.bf16.msra.mxu0 0
      %557 = vmatprep.subr.bf16.mxu0 0
      %558 = vmatpush1.bf16.msra.mxu0 0
      %559 = vmatprep.subr.bf16.mxu0 0
      %560 = vmatpush1.bf16.msra.mxu0 0
      %561 = vmatprep.subr.bf16.mxu0 0
      %562 = vmatpush1.bf16.msra.mxu0 0
      %563 = vmatprep.subr.bf16.mxu0 0
      %564 = vmatpush1.bf16.msra.mxu0 0
      %565 = vmatprep.subr.bf16.mxu0 0
      %566 = vmatpush1.bf16.msra.mxu0 0
      %567 = vmatprep.subr.bf16.mxu0 0
      %568 = vmatpush1.bf16.msra.mxu0 0
      %569 = vmatprep.subr.bf16.mxu0 0
      %570 = vmatpush1.bf16.msra.mxu0 0
      %571 = vmatprep.subr.bf16.mxu0 0
      %572 = vmatpush1.bf16.msra.mxu0 0
      %573 = vmatprep.subr.bf16.mxu0 0
      %574 = vmatpush1.bf16.msra.mxu0 0
      %575 = vmatprep.subr.bf16.mxu0 0
      %576 = vmatpush1.bf16.msra.mxu0 0
      %577 = vmatprep.subr.bf16.mxu0 0
      %578 = vmatpush1.bf16.msra.mxu0 0
      %579 = vmatprep.subr.bf16.mxu0 0
      %580 = vmatpush1.bf16.msra.mxu0 0
      %581 = vmatprep.subr.bf16.mxu0 0
      %582 = vmatpush1.bf16.msra.mxu0 0
      %583 = vmatprep.mubr.bf16.mxu0 0
      %584 = vmatmul.mubr.bf16.gmra.mrb[0].mxu0 %v543
      %v585 = vpop.f32.mrb[0].mxu0
      %v586 = vadd.f32 0.0, %v585
      %v587 = vpop.f32.mrb[0].mxu0
      %v588 = vadd.f32 0.0, %v587
      %v589 = vpop.f32.mrb[0].mxu0
      %v590 = vpop.f32.mrb[0].mxu0
      %591 = vdwg.mxu0
      %v592 = vadd.f32 %v511, %v586
      %v593 = vadd.f32 %v512, %v588
      %v594 = vld [vmem:[%s262] sm:$0x3f]
      %s595 = scalar_lea.vmem %s1, 16
      %v596 = vld [vmem:[%s595] sm:$0xf]
      %v598 = vcombine.high %v594, %v594
      %v600 = vunpack.c.l.s4 1983009808
      %v601 = vunpack.c.0.s8 %v600
      %v602 = vlaneseq
      %v603 = vshrl.u32 %v602, 7
      %v604 = vsub.s32 %v601, %v603
      %v605 = vrot.slane %v594, %v604
      %v607 = vunpack.c.l.s4 1983009808
      %v608 = vunpack.c.0.s8 %v607
      %v609 = vlaneseq
      %v610 = vshrl.u32 %v609, 7
      %v611 = vsub.s32 %v608, %v610
      %v612 = vrot.slane %v598, %v611
      %v613 = vcombine.high %v605, %v605
      %614 = vrot.lane.b32.xlu0 %v605, 111
      %v615 = vpop.permute.xlu0 %614
      %616 = vrot.lane.b32.xlu0 %v613, 111
      %v617 = vpop.permute.xlu0 %616
      %618 = vrot.lane.b32.xlu0 %v612, 111
      %v619 = vpop.permute.xlu0 %618
      %vm620 = vcmask 908288
      %v621 = vsel %vm620, %v615, %v617
      %v622 = vsel %vm620, %v617, %v619
      %v624 = vsel %vm321, %v596, 0
      %v627 = vsel %vm325, %v621, 0
      %v630 = vsel %vm325, %v622, 0
      %632 = vmatprep.subr.bf16.mxu0 %v630
      %633 = vmatpush1.bf16.msra.mxu0 %v627
      %634 = vmatprep.subr.bf16.mxu0 0
      %635 = vmatpush1.bf16.msra.mxu0 0
      %636 = vmatprep.subr.bf16.mxu0 0
      %637 = vmatpush1.bf16.msra.mxu0 0
      %638 = vmatprep.subr.bf16.mxu0 0
      %639 = vmatpush1.bf16.msra.mxu0 0
      %640 = vmatprep.subr.bf16.mxu0 0
      %641 = vmatpush1.bf16.msra.mxu0 0
      %642 = vmatprep.subr.bf16.mxu0 0
      %643 = vmatpush1.bf16.msra.mxu0 0
      %644 = vmatprep.subr.bf16.mxu0 0
      %645 = vmatpush1.bf16.msra.mxu0 0
      %646 = vmatprep.subr.bf16.mxu0 0
      %647 = vmatpush1.bf16.msra.mxu0 0
      %648 = vmatprep.subr.bf16.mxu0 0
      %649 = vmatpush1.bf16.msra.mxu0 0
      %650 = vmatprep.subr.bf16.mxu0 0
      %651 = vmatpush1.bf16.msra.mxu0 0
      %652 = vmatprep.subr.bf16.mxu0 0
      %653 = vmatpush1.bf16.msra.mxu0 0
      %654 = vmatprep.subr.bf16.mxu0 0
      %655 = vmatpush1.bf16.msra.mxu0 0
      %656 = vmatprep.subr.bf16.mxu0 0
      %657 = vmatpush1.bf16.msra.mxu0 0
      %658 = vmatprep.subr.bf16.mxu0 0
      %659 = vmatpush1.bf16.msra.mxu0 0
      %660 = vmatprep.subr.bf16.mxu0 0
      %661 = vmatpush1.bf16.msra.mxu0 0
      %662 = vmatprep.subr.bf16.mxu0 0
      %663 = vmatpush1.bf16.msra.mxu0 0
      %664 = vmatprep.mubr.bf16.mxu0 0
      %665 = vmatmul.mubr.bf16.gmra.mrb[0].mxu0 %v624
      %v666 = vpop.f32.mrb[0].mxu0
      %v667 = vadd.f32 0.0, %v666
      %v668 = vpop.f32.mrb[0].mxu0
      %v669 = vadd.f32 0.0, %v668
      %v670 = vpop.f32.mrb[0].mxu0
      %v671 = vpop.f32.mrb[0].mxu0
      %672 = vdwg.mxu0
      %v673 = vadd.f32 %v592, %v667
      %v674 = vadd.f32 %v593, %v669
      %v675 = vld [vmem:[%s262] sm:$0x3f]
      %s676 = scalar_lea.vmem %s1, 20
      %v677 = vld [vmem:[%s676] sm:$0xf]
      %v679 = vcombine.high %v675, %v675
      %v681 = vunpack.c.l.s4 1983009808
      %v682 = vunpack.c.0.s8 %v681
      %v683 = vlaneseq
      %v684 = vshrl.u32 %v683, 7
      %v685 = vsub.s32 %v682, %v684
      %v686 = vrot.slane %v675, %v685
      %v688 = vunpack.c.l.s4 1983009808
      %v689 = vunpack.c.0.s8 %v688
      %v690 = vlaneseq
      %v691 = vshrl.u32 %v690, 7
      %v692 = vsub.s32 %v689, %v691
      %v693 = vrot.slane %v679, %v692
      %v694 = vcombine.high %v686, %v686
      %695 = vrot.lane.b32.xlu0 %v686, 110
      %v696 = vpop.permute.xlu0 %695
      %697 = vrot.lane.b32.xlu0 %v694, 110
      %v698 = vpop.permute.xlu0 %697
      %699 = vrot.lane.b32.xlu0 %v693, 110
      %v700 = vpop.permute.xlu0 %699
      %vm701 = vcmask 900096
      %v702 = vsel %vm701, %v696, %v698
      %v703 = vsel %vm701, %v698, %v700
      %v705 = vsel %vm321, %v677, 0
      %v708 = vsel %vm325, %v702, 0
      %v711 = vsel %vm325, %v703, 0
      %713 = vmatprep.subr.bf16.mxu0 %v711
      %714 = vmatpush1.bf16.msra.mxu0 %v708
      %715 = vmatprep.subr.bf16.mxu0 0
      %716 = vmatpush1.bf16.msra.mxu0 0
      %717 = vmatprep.subr.bf16.mxu0 0
      %718 = vmatpush1.bf16.msra.mxu0 0
      %719 = vmatprep.subr.bf16.mxu0 0
      %720 = vmatpush1.bf16.msra.mxu0 0
      %721 = vmatprep.subr.bf16.mxu0 0
      %722 = vmatpush1.bf16.msra.mxu0 0
      %723 = vmatprep.subr.bf16.mxu0 0
      %724 = vmatpush1.bf16.msra.mxu0 0
      %725 = vmatprep.subr.bf16.mxu0 0
      %726 = vmatpush1.bf16.msra.mxu0 0
      %727 = vmatprep.subr.bf16.mxu0 0
      %728 = vmatpush1.bf16.msra.mxu0 0
      %729 = vmatprep.subr.bf16.mxu0 0
      %730 = vmatpush1.bf16.msra.mxu0 0
      %731 = vmatprep.subr.bf16.mxu0 0
      %732 = vmatpush1.bf16.msra.mxu0 0
      %733 = vmatprep.subr.bf16.mxu0 0
      %734 = vmatpush1.bf16.msra.mxu0 0
      %735 = vmatprep.subr.bf16.mxu0 0
      %736 = vmatpush1.bf16.msra.mxu0 0
      %737 = vmatprep.subr.bf16.mxu0 0
      %738 = vmatpush1.bf16.msra.mxu0 0
      %739 = vmatprep.subr.bf16.mxu0 0
      %740 = vmatpush1.bf16.msra.mxu0 0
      %741 = vmatprep.subr.bf16.mxu0 0
      %742 = vmatpush1.bf16.msra.mxu0 0
      %743 = vmatprep.subr.bf16.mxu0 0
      %744 = vmatpush1.bf16.msra.mxu0 0
      %745 = vmatprep.mubr.bf16.mxu0 0
      %746 = vmatmul.mubr.bf16.gmra.mrb[0].mxu0 %v705
      %v747 = vpop.f32.mrb[0].mxu0
      %v748 = vadd.f32 0.0, %v747
      %v749 = vpop.f32.mrb[0].mxu0
      %v750 = vadd.f32 0.0, %v749
      %v751 = vpop.f32.mrb[0].mxu0
      %v752 = vpop.f32.mrb[0].mxu0
      %753 = vdwg.mxu0
      %v754 = vadd.f32 %v673, %v748
      %v755 = vadd.f32 %v674, %v750
      %v756 = vld [vmem:[%s262] sm:$0x3f]
      %s757 = scalar_lea.vmem %s1, 24
      %v758 = vld [vmem:[%s757] sm:$0xf]
      %v760 = vcombine.high %v756, %v756
      %v762 = vunpack.c.l.s4 1983009808
      %v763 = vunpack.c.0.s8 %v762
      %v764 = vlaneseq
      %v765 = vshrl.u32 %v764, 7
      %v766 = vsub.s32 %v763, %v765
      %v767 = vrot.slane %v756, %v766
      %v769 = vunpack.c.l.s4 1983009808
      %v770 = vunpack.c.0.s8 %v769
      %v771 = vlaneseq
      %v772 = vshrl.u32 %v771, 7
      %v773 = vsub.s32 %v770, %v772
      %v774 = vrot.slane %v760, %v773
      %v775 = vcombine.high %v767, %v767
      %776 = vrot.lane.b32.xlu0 %v767, 96
      %v777 = vpop.permute.xlu0 %776
      %778 = vrot.lane.b32.xlu0 %v775, 96
      %v779 = vpop.permute.xlu0 %778
      %780 = vrot.lane.b32.xlu0 %v774, 96
      %v781 = vpop.permute.xlu0 %780
      %vm782 = vcmask 785408
      %v783 = vsel %vm782, %v777, %v779
      %v784 = vsel %vm782, %v779, %v781
      %v786 = vsel %vm321, %v758, 0
      %v789 = vsel %vm325, %v783, 0
      %v792 = vsel %vm325, %v784, 0
      %794 = vmatprep.subr.bf16.mxu0 %v792
      %795 = vmatpush1.bf16.msra.mxu0 %v789
      %796 = vmatprep.subr.bf16.mxu0 0
      %797 = vmatpush1.bf16.msra.mxu0 0
      %798 = vmatprep.subr.bf16.mxu0 0
      %799 = vmatpush1.bf16.msra.mxu0 0
      %800 = vmatprep.subr.bf16.mxu0 0
      %801 = vmatpush1.bf16.msra.mxu0 0
      %802 = vmatprep.subr.bf16.mxu0 0
      %803 = vmatpush1.bf16.msra.mxu0 0
      %804 = vmatprep.subr.bf16.mxu0 0
      %805 = vmatpush1.bf16.msra.mxu0 0
      %806 = vmatprep.subr.bf16.mxu0 0
      %807 = vmatpush1.bf16.msra.mxu0 0
      %808 = vmatprep.subr.bf16.mxu0 0
      %809 = vmatpush1.bf16.msra.mxu0 0
      %810 = vmatprep.subr.bf16.mxu0 0
      %811 = vmatpush1.bf16.msra.mxu0 0
      %812 = vmatprep.subr.bf16.mxu0 0
      %813 = vmatpush1.bf16.msra.mxu0 0
      %814 = vmatprep.subr.bf16.mxu0 0
      %815 = vmatpush1.bf16.msra.mxu0 0
      %816 = vmatprep.subr.bf16.mxu0 0
      %817 = vmatpush1.bf16.msra.mxu0 0
      %818 = vmatprep.subr.bf16.mxu0 0
      %819 = vmatpush1.bf16.msra.mxu0 0
      %820 = vmatprep.subr.bf16.mxu0 0
      %821 = vmatpush1.bf16.msra.mxu0 0
      %822 = vmatprep.subr.bf16.mxu0 0
      %823 = vmatpush1.bf16.msra.mxu0 0
      %824 = vmatprep.subr.bf16.mxu0 0
      %825 = vmatpush1.bf16.msra.mxu0 0
      %826 = vmatprep.mubr.bf16.mxu0 0
      %827 = vmatmul.mubr.bf16.gmra.mrb[0].mxu0 %v786
      %v828 = vpop.f32.mrb[0].mxu0
      %v829 = vadd.f32 0.0, %v828
      %v830 = vpop.f32.mrb[0].mxu0
      %v831 = vadd.f32 0.0, %v830
      %v832 = vpop.f32.mrb[0].mxu0
      %v833 = vpop.f32.mrb[0].mxu0
      %834 = vdwg.mxu0
      %v835 = vadd.f32 %v754, %v829
      %v836 = vadd.f32 %v755, %v831
      %v837 = vld [vmem:[%s262] sm:$0x3f]
      %s838 = scalar_lea.vmem %s1, 28
      %v839 = vld [vmem:[%s838] sm:$0xf]
      %v841 = vcombine.high %v837, %v837
      %v843 = vunpack.c.l.s4 1983009808
      %v844 = vunpack.c.0.s8 %v843
      %v845 = vlaneseq
      %v846 = vshrl.u32 %v845, 7
      %v847 = vsub.s32 %v844, %v846
      %v848 = vrot.slane %v837, %v847
      %v850 = vunpack.c.l.s4 1983009808
      %v851 = vunpack.c.0.s8 %v850
      %v852 = vlaneseq
      %v853 = vshrl.u32 %v852, 7
      %v854 = vsub.s32 %v851, %v853
      %v855 = vrot.slane %v841, %v854
      %v856 = vcombine.high %v848, %v848
      %857 = vrot.lane.b32.xlu0 %v848, 95
      %v858 = vpop.permute.xlu0 %857
      %859 = vrot.lane.b32.xlu0 %v856, 95
      %v860 = vpop.permute.xlu0 %859
      %861 = vrot.lane.b32.xlu0 %v855, 95
      %v862 = vpop.permute.xlu0 %861
      %vm863 = vcmask 777216
      %v864 = vsel %vm863, %v858, %v860
      %v865 = vsel %vm863, %v860, %v862
      %v867 = vsel %vm321, %v839, 0
      %v870 = vsel %vm325, %v864, 0
      %v873 = vsel %vm325, %v865, 0
      %875 = vmatprep.subr.bf16.mxu0 %v873
      %876 = vmatpush1.bf16.msra.mxu0 %v870
      %877 = vmatprep.subr.bf16.mxu0 0
      %878 = vmatpush1.bf16.msra.mxu0 0
      %879 = vmatprep.subr.bf16.mxu0 0
      %880 = vmatpush1.bf16.msra.mxu0 0
      %881 = vmatprep.subr.bf16.mxu0 0
      %882 = vmatpush1.bf16.msra.mxu0 0
      %883 = vmatprep.subr.bf16.mxu0 0
      %884 = vmatpush1.bf16.msra.mxu0 0
      %885 = vmatprep.subr.bf16.mxu0 0
      %886 = vmatpush1.bf16.msra.mxu0 0
      %887 = vmatprep.subr.bf16.mxu0 0
      %888 = vmatpush1.bf16.msra.mxu0 0
      %889 = vmatprep.subr.bf16.mxu0 0
      %890 = vmatpush1.bf16.msra.mxu0 0
      %891 = vmatprep.subr.bf16.mxu0 0
      %892 = vmatpush1.bf16.msra.mxu0 0
      %893 = vmatprep.subr.bf16.mxu0 0
      %894 = vmatpush1.bf16.msra.mxu0 0
      %895 = vmatprep.subr.bf16.mxu0 0
      %896 = vmatpush1.bf16.msra.mxu0 0
      %897 = vmatprep.subr.bf16.mxu0 0
      %898 = vmatpush1.bf16.msra.mxu0 0
      %899 = vmatprep.subr.bf16.mxu0 0
      %900 = vmatpush1.bf16.msra.mxu0 0
      %901 = vmatprep.subr.bf16.mxu0 0
      %902 = vmatpush1.bf16.msra.mxu0 0
      %903 = vmatprep.subr.bf16.mxu0 0
      %904 = vmatpush1.bf16.msra.mxu0 0
      %905 = vmatprep.subr.bf16.mxu0 0
      %906 = vmatpush1.bf16.msra.mxu0 0
      %907 = vmatprep.mubr.bf16.mxu0 0
      %908 = vmatmul.mubr.bf16.gmra.mrb[0].mxu0 %v867
      %v909 = vpop.f32.mrb[0].mxu0
      %v910 = vadd.f32 0.0, %v909
      %v911 = vpop.f32.mrb[0].mxu0
      %v912 = vadd.f32 0.0, %v911
      %v913 = vpop.f32.mrb[0].mxu0
      %v914 = vpop.f32.mrb[0].mxu0
      %915 = vdwg.mxu0
      %v916 = vadd.f32 %v835, %v910
      %v917 = vadd.f32 %v836, %v912
      %v918 = vld [vmem:[%s262] sm:$0x3f]
      %s919 = scalar_lea.vmem %s1, 32
      %v920 = vld [vmem:[%s919] sm:$0xf]
      %v922 = vcombine.high %v918, %v918
      %v924 = vunpack.c.l.s4 1983009808
      %v925 = vunpack.c.0.s8 %v924
      %v926 = vlaneseq
      %v927 = vshrl.u32 %v926, 7
      %v928 = vsub.s32 %v925, %v927
      %v929 = vrot.slane %v918, %v928
      %v931 = vunpack.c.l.s4 1983009808
      %v932 = vunpack.c.0.s8 %v931
      %v933 = vlaneseq
      %v934 = vshrl.u32 %v933, 7
      %v935 = vsub.s32 %v932, %v934
      %v936 = vrot.slane %v922, %v935
      %v937 = vcombine.high %v929, %v929
      %938 = vrot.lane.b32.xlu0 %v929, 94
      %v939 = vpop.permute.xlu0 %938
      %940 = vrot.lane.b32.xlu0 %v937, 94
      %v941 = vpop.permute.xlu0 %940
      %942 = vrot.lane.b32.xlu0 %v936, 94
      %v943 = vpop.permute.xlu0 %942
      %vm944 = vcmask 769024
      %v945 = vsel %vm944, %v939, %v941
      %v946 = vsel %vm944, %v941, %v943
      %v948 = vsel %vm321, %v920, 0
      %v951 = vsel %vm325, %v945, 0
      %v954 = vsel %vm325, %v946, 0
      %956 = vmatprep.subr.bf16.mxu0 %v954
      %957 = vmatpush1.bf16.msra.mxu0 %v951
      %958 = vmatprep.subr.bf16.mxu0 0
      %959 = vmatpush1.bf16.msra.mxu0 0
      %960 = vmatprep.subr.bf16.mxu0 0
      %961 = vmatpush1.bf16.msra.mxu0 0
      %962 = vmatprep.subr.bf16.mxu0 0
      %963 = vmatpush1.bf16.msra.mxu0 0
      %964 = vmatprep.subr.bf16.mxu0 0
      %965 = vmatpush1.bf16.msra.mxu0 0
      %966 = vmatprep.subr.bf16.mxu0 0
      %967 = vmatpush1.bf16.msra.mxu0 0
      %968 = vmatprep.subr.bf16.mxu0 0
      %969 = vmatpush1.bf16.msra.mxu0 0
      %970 = vmatprep.subr.bf16.mxu0 0
      %971 = vmatpush1.bf16.msra.mxu0 0
      %972 = vmatprep.subr.bf16.mxu0 0
      %973 = vmatpush1.bf16.msra.mxu0 0
      %974 = vmatprep.subr.bf16.mxu0 0
      %975 = vmatpush1.bf16.msra.mxu0 0
      %976 = vmatprep.subr.bf16.mxu0 0
      %977 = vmatpush1.bf16.msra.mxu0 0
      %978 = vmatprep.subr.bf16.mxu0 0
      %979 = vmatpush1.bf16.msra.mxu0 0
      %980 = vmatprep.subr.bf16.mxu0 0
      %981 = vmatpush1.bf16.msra.mxu0 0
      %982 = vmatprep.subr.bf16.mxu0 0
      %983 = vmatpush1.bf16.msra.mxu0 0
      %984 = vmatprep.subr.bf16.mxu0 0
      %985 = vmatpush1.bf16.msra.mxu0 0
      %986 = vmatprep.subr.bf16.mxu0 0
      %987 = vmatpush1.bf16.msra.mxu0 0
      %988 = vmatprep.mubr.bf16.mxu0 0
      %989 = vmatmul.mubr.bf16.gmra.mrb[0].mxu0 %v948
      %v990 = vpop.f32.mrb[0].mxu0
      %v991 = vadd.f32 0.0, %v990
      %v992 = vpop.f32.mrb[0].mxu0
      %v993 = vadd.f32 0.0, %v992
      %v994 = vpop.f32.mrb[0].mxu0
      %v995 = vpop.f32.mrb[0].mxu0
      %996 = vdwg.mxu0
      %v997 = vadd.f32 %v916, %v991
      %v998 = vadd.f32 %v917, %v993
      %v999 = vld [vmem:[%s2] sm:$0x3]
      %v1001 = vlaneseq
      %v1002 = vshrl.u32 %v1001, 7
      %v1003 = vsub.s32 0, %v1002
      %v1004 = vrot.slane %v999, %v1003
      %v1005 = vlaneseq
      %v1006 = vshrl.u32 %v1005, 7
      %v1007 = vsub.s32 1, %v1006
      %v1008 = vrot.slane %v999, %v1007
      %v1011 = vmul.f32 %v997, %v1004
      %v1012 = vmul.f32 %v998, %v1008
      %v1013 = vpack.c.bf16 %v1011, %v1011
      %v1014 = vpack.c.bf16 %v1012, %v1012
      %v1017 = vunpack.c.l.b16 %v1013
      %v1018 = vunpack.c.l.b16 %v1014
      %v1019 = vpack.c.b16 %v1018, %v1017
      %1021 = vst [vmem:[%s271] sm:$0xff] %v1019
      %v1022 = vld [vmem:[%s277] sm:$0xff]
      %v1023 = vadd.f32 %v1011, %v1012
      %1024 = vadd.xlane.f32.xlu0 %v1023
      %v1025 = vpop.xlane.xlu0 %1024
      %v1026 = vadd.f32 %v1022, %v1025
      %vm1027 = vcmask 7168
      %1028 = vst.msk [vmem:[%s277] sm:$0xff] %vm1027, %v1026
      %v1029 = vld [vmem:[%s281] sm:$0xff]
      %v1030 = vmul.f32 %v1011, %v1011
      %v1031 = vmul.f32 %v1012, %v1012
      %v1032 = vadd.f32 %v1030, %v1031
      %1033 = vadd.xlane.f32.xlu0 %v1032
      %v1034 = vpop.xlane.xlu0 %1033
      %v1035 = vadd.f32 %v1029, %v1034
      %1036 = vst.msk [vmem:[%s281] sm:$0xff] %vm1027, %v1035
      %s1037 = smul.u32 %s21, 2
      %s1038 = sadd.s32 %s1037, %s22
      %p1039 = scmp.lt.s32.totalorder %s1038, 3
      %s1040 = scalar_select %p1039, %s1038, 3
      %s1041 = smul.addr %s1040, 2
      %s1042 = smul.addr %s1041, 4
      %s1043 = scalar_lea.vmem %s3, %s1042
      %p1044 = scmp.lt.s32.totalorder %s21, 1
      %s1045 = scalar_select %p1044, %s21, 1
      %s1046 = smul.addr %s1045, 8
      %s1047 = scalar_lea.vmem %s4, %s1046
      %p1048 = scmp.lt.s32.totalorder %s21, 1
      %s1049 = scalar_select %p1048, %s21, 1
      %s1050 = smul.addr %s1049, 8
      %s1051 = scalar_lea.vmem %s5, %s1050
      // Predicated region
      $region37: #{conv3x3_forward.2} parent=31 // pred_check
        %p1052 = pneg %p123
      $region38: #{conv3x3_forward.2} parent=31 // pred_check_branch
        %1054 = sbr.rel (%p1052) target = $region40
      $region39: #{conv3x3_forward.2} parent=31 // pred_region
        %s1055 = smul.u32 %s21, 2
        %s1056 = sadd.s32 %s1055, %s22
      $region40: #{conv3x3_forward.2} parent=31 // pred_fallthru
        _
      // Predicated region
      $region41: #{conv3x3_forward.2} parent=31 // pred_check
        %p1057 = pneg %p149
      $region42: #{conv3x3_forward.2} parent=31 // pred_check_branch
        %1059 = sbr.rel (%p1057) target = $region44
      $region43: #{conv3x3_forward.2} parent=31 // pred_region
        _
      $region44: #{conv3x3_forward.2} parent=31 // pred_fallthru
        _
      // Predicated region
      $region45: #{conv3x3_forward.2} parent=31 // pred_check
        %p1060 = pneg %p175
      $region46: #{conv3x3_forward.2} parent=31 // pred_check_branch
        %1062 = sbr.rel (%p1060) target = $region48
      $region47: #{conv3x3_forward.2} parent=31 // pred_region
        _
      $region48: #{conv3x3_forward.2} parent=31 // pred_fallthru
        _
    $region32: #{conv3x3_forward.2} parent=5 // pred_fallthru
      _
    %p1063 = scmp.le.s32.totalorder 2, %s12
    // Predicated region
    $region49: #{conv3x3_forward.2} parent=5 // pred_check
      %p1064 = pneg %p1063
    $region50: #{conv3x3_forward.2} parent=5 // pred_check_branch
      %1066 = sbr.rel (%p1064) target = $region52
    $region51: #{conv3x3_forward.2} parent=5 // pred_region
      %s1067 = ssub.s32 %s12, 2
      // Predicated region
      $region53: #{conv3x3_forward.2} parent=51 // pred_check
        %p1068 = pneg %p129
      $region54: #{conv3x3_forward.2} parent=51 // pred_check_branch
        %1070 = sbr.rel (%p1068) target = $region56
      $region55: #{conv3x3_forward.2} parent=51 // pred_region
        %s1071 = smul.u32 %s23, 2
        %s1072 = sadd.s32 %s1071, %s24
        %p1073 = scmp.lt.s32.totalorder %s1072, 3
        %s1074 = scalar_select %p1073, %s1072, 3
        %s1075 = smul.addr %s1074, 2
        %s1076 = smul.addr %s1075, 4
        %s1077 = scalar_lea.vmem %s3, %s1076
      $region56: #{conv3x3_forward.2} parent=51 // pred_fallthru
        _
      // Predicated region
      $region57: #{conv3x3_forward.2} parent=51 // pred_check
        %p1078 = pneg %p155
      $region58: #{conv3x3_forward.2} parent=51 // pred_check_branch
        %1080 = sbr.rel (%p1078) target = $region60
      $region59: #{conv3x3_forward.2} parent=51 // pred_region
        %p1081 = scmp.lt.s32.totalorder %s23, 1
        %s1082 = scalar_select %p1081, %s23, 1
        %s1083 = smul.addr %s1082, 8
        %s1084 = scalar_lea.vmem %s4, %s1083
      $region60: #{conv3x3_forward.2} parent=51 // pred_fallthru
        _
      // Predicated region
      $region61: #{conv3x3_forward.2} parent=51 // pred_check
        %p1085 = pneg %p181
      $region62: #{conv3x3_forward.2} parent=51 // pred_check_branch
        %1087 = sbr.rel (%p1085) target = $region64
      $region63: #{conv3x3_forward.2} parent=51 // pred_region
        %p1088 = scmp.lt.s32.totalorder %s23, 1
        %s1089 = scalar_select %p1088, %s23, 1
        %s1090 = smul.addr %s1089, 8
        %s1091 = scalar_lea.vmem %s5, %s1090
      $region64: #{conv3x3_forward.2} parent=51 // pred_fallthru
        _
    $region52: #{conv3x3_forward.2} parent=5 // pred_fallthru
      _
  $region6: #{conv3x3_forward.2} parent=0 // loop_footer
    %s16 = sadd.s32 1, %s12
  $region7: #{conv3x3_forward.2} parent=0 // loop_footer_branch
    %11 = sbr.rel target = $region3
  $region8: #{conv3x3_forward.2} parent=0 // loop_exit
    _

</llo_original>
